<compile_context>
chip_gen: v6e
topology: v6e:2x2x1
jax: 0.10.0
libtpu: 0.0.40
codegen_flags: <defaults>
</compile_context>

<pallas_src>
import jax
import jax.numpy as jnp
from jax.experimental import pallas as pl
from jax.experimental.pallas import tpu as pltpu

HIDDEN_SIZE = 512
INPUT_SHAPE = 28 * 28          # 784 (multiple of 16 -> bf16 sublane-exact for w1)
OUTPUT_CLASSES = 10
N_PAD = 128                    # logits padded 10 -> 128 (lane-dense store)


def _round_up(x, m):
    return -(-x // m) * m


def _choose_tm(batch, tm_max=512):
    """Batch-tile size: multiple of 16 (bf16 sublane packing), <= tm_max, and
    (when batch > 16) at least two tiles so v7x's two TensorCores both get
    work.  Prefers a tile that exactly divides the batch so there are no
    padded rows and no post-call slice copy of h."""
    if batch <= 16:
        return 16
    target = min(tm_max, _round_up((batch + 1) // 2, 16))   # ~B/2 -> >=2 tiles
    t = target
    while t >= max(16, target // 2):
        if batch % t == 0:
            return t
        t -= 16
    return target


def _mlp_kernel(x_ref, w1_ref, b1_ref, w2_ref, b2_ref, w3_ref, b3_ref,
                out_ref, h_ref):
    # fc1 + ReLU (dropout1 == identity in eval mode).
    # x arrives as f32 from HBM and is cast to bf16 on-chip (no wrapper-side
    # pad/cast round trip).  bf16 operands, f32 accumulation on the MXU;
    # K=784 contraction remainder is masked by Mosaic (validated vs. reference).
    x = x_ref[...].astype(jnp.bfloat16)
    z1 = jnp.dot(x, w1_ref[...], preferred_element_type=jnp.float32) + b1_ref[...]
    a1 = jnp.maximum(z1, 0.0).astype(jnp.bfloat16)

    # fc2 + ReLU -> h (returned pre-dropout, matching the PyTorch module).
    z2 = jnp.dot(a1, w2_ref[...], preferred_element_type=jnp.float32) + b2_ref[...]
    h = jnp.maximum(z2, 0.0)
    h_ref[...] = h.astype(h_ref.dtype)          # bf16 store by default

    # output linear (dropout2 == identity in eval mode); lane-dense 128-wide
    # logits store (padded columns carry zero weights/bias).
    logits = (jnp.dot(h.astype(jnp.bfloat16), w3_ref[...],
                      preferred_element_type=jnp.float32) + b3_ref[...])
    out_ref[...] = logits.astype(out_ref.dtype)


def pack_params(params):
    """One-time packing of raw f32 params (weights pre-transposed to (in,out)):
    bf16 weights, logits columns zero-padded 10 -> 128, f32 (1, N) biases.
    Do this ONCE and reuse across calls — it is the hot-loop-free path."""
    w1, b1, w2, b2, w3, b3 = params
    w3p = jnp.pad(w3, ((0, 0), (0, N_PAD - OUTPUT_CLASSES)))
    b3p = jnp.pad(b3, ((0, N_PAD - OUTPUT_CLASSES),))
    return (
        w1.astype(jnp.bfloat16),
        b1.reshape(1, -1).astype(jnp.float32),
        w2.astype(jnp.bfloat16),
        b2.reshape(1, -1).astype(jnp.float32),
        w3p.astype(jnp.bfloat16),
        b3p.reshape(1, -1).astype(jnp.float32),
    )


def mlp_forward(x_nchw, packed_params, *, tm_max=512, h_dtype=jnp.bfloat16):
    """x_nchw: (B, 1, 28, 28) float32.  packed_params: output of pack_params.
    Returns (logits (B, 10) f32, h (B, 512) h_dtype)."""
    w1b, b1r, w2b, b2r, w3b, b3r = packed_params
    B = x_nchw.shape[0]
    x = x_nchw.reshape(B, INPUT_SHAPE).astype(jnp.float32)   # flatten (free)

    # ---- batch tiling ------------------------------------------------------
    tm = _choose_tm(B, tm_max)
    b_pad = _round_up(B, tm)
    if b_pad != B:
        x = jnp.pad(x, ((0, b_pad - B), (0, 0)))
    grid = (b_pad // tm,)

    flops = 2 * b_pad * (INPUT_SHAPE * HIDDEN_SIZE
                         + HIDDEN_SIZE * HIDDEN_SIZE
                         + HIDDEN_SIZE * N_PAD)
    bytes_accessed = (
        b_pad * INPUT_SHAPE * 4                                  # x (f32)
        + (w1b.size + w2b.size + w3b.size) * 2                   # bf16 weights
        + (b1r.size + b2r.size + b3r.size) * 4                   # f32 biases
        + b_pad * N_PAD * 4                                      # logits (f32)
        + b_pad * HIDDEN_SIZE * jnp.dtype(h_dtype).itemsize      # h
    )

    fn = pl.pallas_call(
        _mlp_kernel,
        out_shape=(
            jax.ShapeDtypeStruct((b_pad, N_PAD), jnp.float32),
            jax.ShapeDtypeStruct((b_pad, HIDDEN_SIZE), h_dtype),
        ),
        grid_spec=pltpu.PrefetchScalarGridSpec(
            num_scalar_prefetch=0,
            grid=grid,
            in_specs=[
                # activations: one batch tile per grid step, f32, full 784 cols
                pl.BlockSpec((tm, INPUT_SHAPE), lambda i: (i, 0)),
                # weights/biases: same block every step -> VMEM-resident
                # (double-buffered copy of constants accepted knowingly).
                pl.BlockSpec((INPUT_SHAPE, HIDDEN_SIZE), lambda i: (0, 0)),
                pl.BlockSpec((1, HIDDEN_SIZE), lambda i: (0, 0)),
                pl.BlockSpec((HIDDEN_SIZE, HIDDEN_SIZE), lambda i: (0, 0)),
                pl.BlockSpec((1, HIDDEN_SIZE), lambda i: (0, 0)),
                pl.BlockSpec((HIDDEN_SIZE, N_PAD), lambda i: (0, 0)),
                pl.BlockSpec((1, N_PAD), lambda i: (0, 0)),
            ],
            out_specs=(
                pl.BlockSpec((tm, N_PAD), lambda i: (i, 0)),
                pl.BlockSpec((tm, HIDDEN_SIZE), lambda i: (i, 0)),
            ),
        ),
        compiler_params=pltpu.CompilerParams(
            dimension_semantics=("parallel",),   # shard batch tiles across TCs
            vmem_limit_bytes=32 << 20,
        ),
        cost_estimate=pl.CostEstimate(
            flops=flops, transcendentals=0, bytes_accessed=bytes_accessed),
    )
    logits_pad, h_pad = fn(x, w1b, b1r, w2b, b2r, w3b, b3r)
    logits = logits_pad[:B, :OUTPUT_CLASSES]
    h = h_pad if b_pad == B else h_pad[:B]
    return logits, h


def init_params(key):
    """Deterministic init mirroring nn.Linear shapes (weights pre-transposed
    to (in, out))."""
    k1, k2, k3, k4, k5, k6 = jax.random.split(key, 6)

    def unif(k, shape, fan_in):
        bound = 1.0 / jnp.sqrt(fan_in)
        return jax.random.uniform(k, shape, jnp.float32, -bound, bound)

    w1 = unif(k1, (INPUT_SHAPE, HIDDEN_SIZE), INPUT_SHAPE)
    b1 = unif(k2, (HIDDEN_SIZE,), INPUT_SHAPE)
    w2 = unif(k3, (HIDDEN_SIZE, HIDDEN_SIZE), HIDDEN_SIZE)
    b2 = unif(k4, (HIDDEN_SIZE,), HIDDEN_SIZE)
    w3 = unif(k5, (HIDDEN_SIZE, OUTPUT_CLASSES), HIDDEN_SIZE)
    b3 = unif(k6, (OUTPUT_CLASSES,), HIDDEN_SIZE)
    return (w1, b1, w2, b2, w3, b3)


def reference_forward(x_nchw, params):
    """Reference with the same bf16 operands / f32 accumulation as the kernel."""
    w1, b1, w2, b2, w3, b3 = params
    x = x_nchw.reshape(x_nchw.shape[0], -1)
    xb = x.astype(jnp.bfloat16)
    z1 = jnp.dot(xb, w1.astype(jnp.bfloat16),
                 preferred_element_type=jnp.float32) + b1
    a1 = jnp.maximum(z1, 0.0).astype(jnp.bfloat16)
    z2 = jnp.dot(a1, w2.astype(jnp.bfloat16),
                 preferred_element_type=jnp.float32) + b2
    h = jnp.maximum(z2, 0.0)
    logits = jnp.dot(h.astype(jnp.bfloat16), w3.astype(jnp.bfloat16),
                     preferred_element_type=jnp.float32) + b3
    return logits, h


if __name__ == "__main__":
    key = jax.random.PRNGKey(0)
    kx, kp = jax.random.split(key)

    B = 8
    x = jax.random.normal(kx, (B, 1, 28, 28), dtype=jnp.float32)  # NCHW MNIST
    params = init_params(kp)
    packed = pack_params(params)          # one-time weight packing (hoisted)

    logits, h = mlp_forward(x, packed)
    jax.block_until_ready((logits, h))

    ref_logits, ref_h = reference_forward(x, params)
    assert logits.shape == (B, OUTPUT_CLASSES)
    assert h.shape == (B, HIDDEN_SIZE)
    assert jnp.allclose(logits, ref_logits, atol=2e-3, rtol=2e-3)
    # h is emitted in bf16 (HBM-bound kernel); compare with bf16 tolerance.
    assert jnp.allclose(h.astype(jnp.float32), ref_h, atol=1e-2, rtol=1e-2)

    print("KERNEL_OK")
</pallas_src>

<mosaic_0001>
module attributes {stable_mosaic.version = 11 : i64} {
  func.func @_mlp_kernel(%arg0: i32, %arg1: memref<16x784xf32, #tpu.memory_space<vmem>>, %arg2: memref<784x512xbf16, #tpu.memory_space<vmem>>, %arg3: memref<1x512xf32, #tpu.memory_space<vmem>>, %arg4: memref<512x512xbf16, #tpu.memory_space<vmem>>, %arg5: memref<1x512xf32, #tpu.memory_space<vmem>>, %arg6: memref<512x128xbf16, #tpu.memory_space<vmem>>, %arg7: memref<1x128xf32, #tpu.memory_space<vmem>>, %arg8: memref<16x128xf32, #tpu.memory_space<vmem>>, %arg9: memref<16x512xbf16, #tpu.memory_space<vmem>>) attributes {dimension_semantics = [#tpu.dimension_semantics<parallel>], iteration_bounds = array<i64: 1>, scalar_prefetch = 0 : i64, scratch_operands = 0 : i64, tpu.core_type = #tpu.core_type<tc>, window_params = [{transform_indices = @transform_0, window_bounds = array<i64: 16, 784>}, {pipeline_mode = #tpu.pipeline_mode<synchronous>, transform_indices = @transform_1, window_bounds = array<i64: 784, 512>}, {pipeline_mode = #tpu.pipeline_mode<synchronous>, transform_indices = @transform_2, window_bounds = array<i64: 1, 512>}, {pipeline_mode = #tpu.pipeline_mode<synchronous>, transform_indices = @transform_3, window_bounds = array<i64: 512, 512>}, {pipeline_mode = #tpu.pipeline_mode<synchronous>, transform_indices = @transform_4, window_bounds = array<i64: 1, 512>}, {pipeline_mode = #tpu.pipeline_mode<synchronous>, transform_indices = @transform_5, window_bounds = array<i64: 512, 128>}, {pipeline_mode = #tpu.pipeline_mode<synchronous>, transform_indices = @transform_6, window_bounds = array<i64: 1, 128>}, {transform_indices = @transform_7, window_bounds = array<i64: 16, 128>}, {transform_indices = @transform_8, window_bounds = array<i64: 16, 512>}]} {
    %c0 = arith.constant 0 : index
    %c0_0 = arith.constant 0 : index
    %0 = vector.load %arg1[%c0, %c0_0] : memref<16x784xf32, #tpu.memory_space<vmem>>, vector<16x784xf32>
    %1 = arith.truncf %0 : vector<16x784xf32> to vector<16x784xbf16>
    %c0_1 = arith.constant 0 : index
    %c0_2 = arith.constant 0 : index
    %2 = vector.load %arg2[%c0_1, %c0_2] : memref<784x512xbf16, #tpu.memory_space<vmem>>, vector<784x512xbf16>
    %cst = arith.constant dense<0.000000e+00> : vector<16x512xf32>
    %3 = tpu.matmul %1, %2, %cst {dimension_numbers = #tpu.dot_dimension_numbers<[1], [0], [0], [1], [0, 0, 1, 1], [], []>} : vector<16x784xbf16>, vector<784x512xbf16>, vector<16x512xf32> -> vector<16x512xf32>
    %c0_3 = arith.constant 0 : index
    %c0_4 = arith.constant 0 : index
    %4 = vector.load %arg3[%c0_3, %c0_4] : memref<1x512xf32, #tpu.memory_space<vmem>>, vector<1x512xf32>
    %5 = vector.broadcast %4 : vector<1x512xf32> to vector<16x512xf32>
    %6 = arith.addf %3, %5 : vector<16x512xf32>
    %cst_5 = arith.constant 0.000000e+00 : f32
    %7 = vector.broadcast %cst_5 : f32 to vector<16x512xf32>
    %8 = arith.maximumf %6, %7 : vector<16x512xf32>
    %9 = arith.truncf %8 : vector<16x512xf32> to vector<16x512xbf16>
    %c0_6 = arith.constant 0 : index
    %c0_7 = arith.constant 0 : index
    %10 = vector.load %arg4[%c0_6, %c0_7] : memref<512x512xbf16, #tpu.memory_space<vmem>>, vector<512x512xbf16>
    %cst_8 = arith.constant dense<0.000000e+00> : vector<16x512xf32>
    %11 = tpu.matmul %9, %10, %cst_8 {dimension_numbers = #tpu.dot_dimension_numbers<[1], [0], [0], [1], [0, 0, 1, 1], [], []>} : vector<16x512xbf16>, vector<512x512xbf16>, vector<16x512xf32> -> vector<16x512xf32>
    %c0_9 = arith.constant 0 : index
    %c0_10 = arith.constant 0 : index
    %12 = vector.load %arg5[%c0_9, %c0_10] : memref<1x512xf32, #tpu.memory_space<vmem>>, vector<1x512xf32>
    %13 = vector.broadcast %12 : vector<1x512xf32> to vector<16x512xf32>
    %14 = arith.addf %11, %13 : vector<16x512xf32>
    %cst_11 = arith.constant 0.000000e+00 : f32
    %15 = vector.broadcast %cst_11 : f32 to vector<16x512xf32>
    %16 = arith.maximumf %14, %15 : vector<16x512xf32>
    %17 = arith.truncf %16 : vector<16x512xf32> to vector<16x512xbf16>
    %c0_12 = arith.constant 0 : index
    %c0_13 = arith.constant 0 : index
    %18 = vector.load %arg9[%c0_12, %c0_13] : memref<16x512xbf16, #tpu.memory_space<vmem>>, vector<16x512xbf16>
    tpu.vector_store %arg9[%c0_12, %c0_13], %17 {strides = array<i32>} : memref<16x512xbf16, #tpu.memory_space<vmem>>, vector<16x512xbf16>,
    %19 = arith.truncf %16 : vector<16x512xf32> to vector<16x512xbf16>
    %c0_14 = arith.constant 0 : index
    %c0_15 = arith.constant 0 : index
    %20 = vector.load %arg6[%c0_14, %c0_15] : memref<512x128xbf16, #tpu.memory_space<vmem>>, vector<512x128xbf16>
    %cst_16 = arith.constant dense<0.000000e+00> : vector<16x128xf32>
    %21 = tpu.matmul %19, %20, %cst_16 {dimension_numbers = #tpu.dot_dimension_numbers<[1], [0], [0], [1], [0, 0, 1, 1], [], []>} : vector<16x512xbf16>, vector<512x128xbf16>, vector<16x128xf32> -> vector<16x128xf32>
    %c0_17 = arith.constant 0 : index
    %c0_18 = arith.constant 0 : index
    %22 = vector.load %arg7[%c0_17, %c0_18] : memref<1x128xf32, #tpu.memory_space<vmem>>, vector<1x128xf32>
    %23 = vector.broadcast %22 : vector<1x128xf32> to vector<16x128xf32>
    %24 = arith.addf %21, %23 : vector<16x128xf32>
    %c0_19 = arith.constant 0 : index
    %c0_20 = arith.constant 0 : index
    %25 = vector.load %arg8[%c0_19, %c0_20] : memref<16x128xf32, #tpu.memory_space<vmem>>, vector<16x128xf32>
    tpu.vector_store %arg8[%c0_19, %c0_20], %24 {strides = array<i32>} : memref<16x128xf32, #tpu.memory_space<vmem>>, vector<16x128xf32>,
    return
  }
  func.func @transform_0(%arg0: i32) -> (i32, i32) {
    %c0_i32 = arith.constant 0 : i32
    %c0_i32_0 = arith.constant 0 : i32
    return %arg0, %c0_i32 : i32, i32
  }
  func.func @transform_1(%arg0: i32) -> (i32, i32) {
    %c0_i32 = arith.constant 0 : i32
    %c0_i32_0 = arith.constant 0 : i32
    %c0_i32_1 = arith.constant 0 : i32
    return %c0_i32, %c0_i32_0 : i32, i32
  }
  func.func @transform_2(%arg0: i32) -> (i32, i32) {
    %c0_i32 = arith.constant 0 : i32
    %c0_i32_0 = arith.constant 0 : i32
    %c0_i32_1 = arith.constant 0 : i32
    return %c0_i32, %c0_i32_0 : i32, i32
  }
  func.func @transform_3(%arg0: i32) -> (i32, i32) {
    %c0_i32 = arith.constant 0 : i32
    %c0_i32_0 = arith.constant 0 : i32
    %c0_i32_1 = arith.constant 0 : i32
    return %c0_i32, %c0_i32_0 : i32, i32
  }
  func.func @transform_4(%arg0: i32) -> (i32, i32) {
    %c0_i32 = arith.constant 0 : i32
    %c0_i32_0 = arith.constant 0 : i32
    %c0_i32_1 = arith.constant 0 : i32
    return %c0_i32, %c0_i32_0 : i32, i32
  }
  func.func @transform_5(%arg0: i32) -> (i32, i32) {
    %c0_i32 = arith.constant 0 : i32
    %c0_i32_0 = arith.constant 0 : i32
    %c0_i32_1 = arith.constant 0 : i32
    return %c0_i32, %c0_i32_0 : i32, i32
  }
  func.func @transform_6(%arg0: i32) -> (i32, i32) {
    %c0_i32 = arith.constant 0 : i32
    %c0_i32_0 = arith.constant 0 : i32
    %c0_i32_1 = arith.constant 0 : i32
    return %c0_i32, %c0_i32_0 : i32, i32
  }
  func.func @transform_7(%arg0: i32) -> (i32, i32) {
    %c0_i32 = arith.constant 0 : i32
    %c0_i32_0 = arith.constant 0 : i32
    return %arg0, %c0_i32 : i32, i32
  }
  func.func @transform_8(%arg0: i32) -> (i32, i32) {
    %c0_i32 = arith.constant 0 : i32
    %c0_i32_0 = arith.constant 0 : i32
    return %arg0, %c0_i32 : i32, i32
  }
}

</mosaic_0001>

<llo_original>
// kernel: tpu_custom_call.1
$region0: #{tpu_custom_call.1}
  #allocation0 [shape = 'u32[]', space=smem, size = 0x4, offset = 0x4, fixed_abs, tag = 'smem constant byte address 0x4 - core index']
  #allocation1 [shape = 'u32[144,128]{1,0:T(1,128)}', space=vmem, size = 0x12000, scoped, tag = 'internal scratch']
  %s0 = inlined_call_operand.hbm [shape: f32[16,784], index: 0, kind: input, shape index: {}]
  %s1 = inlined_call_operand.hbm [shape: bf16[784,512], index: 1, kind: input, shape index: {}]
  %s2 = inlined_call_operand.hbm [shape: f32[1,512], index: 2, kind: input, shape index: {}]
  %s3 = inlined_call_operand.hbm [shape: bf16[512,512], index: 3, kind: input, shape index: {}]
  %s4 = inlined_call_operand.vmem [shape: f32[1,512], index: 4, kind: input, shape index: {}]
  %s5 = inlined_call_operand.hbm [shape: bf16[512,128], index: 5, kind: input, shape index: {}]
  %s6 = inlined_call_operand.vmem [shape: f32[1,128], index: 6, kind: input, shape index: {}]
  %s7 = inlined_call_operand.hbm [shape: f32[16,128], index: 7, kind: output, shape index: {0}]
  %s8 = inlined_call_operand.hbm [shape: bf16[16,512], index: 8, kind: output, shape index: {1}]
  %9 = xla_tuple %s7, %s8
  %s10 = sld [smem:[#allocation0]]
  $region66: #{tpu_custom_call.1} parent=0
    _
  %s12 = ssub.s32 1, %s10
  %s13 = scalar_select 0, %s12, %s10
  $region1: #{tpu_custom_call.1} parent=0
    #allocation2 [shape = 'u8[57344]{0}', space=vmem, size = 0xe000, scoped, tag = 'input window, operand 0, single buffered']
    #allocation3 [shape = 's32[1]{0}', space=sflag, size = 0x4, scoped, tag = 'scoped memory for tpu_custom_call.1']
    #allocation4 [shape = 's32[1]{0}', space=sflag, size = 0x4, scoped, tag = 'scoped memory for tpu_custom_call.1']
    #allocation5 [shape = 'u8[802816]{0}', space=vmem, size = 0xc4000, scoped, tag = 'input window, operand 1, single buffered']
    #allocation6 [shape = 's32[1]{0}', space=sflag, size = 0x4, scoped, tag = 'scoped memory for tpu_custom_call.1']
    #allocation7 [shape = 'u8[2048]{0}', space=vmem, size = 0x800, scoped, tag = 'input window, operand 2, single buffered']
    #allocation8 [shape = 'u8[524288]{0}', space=vmem, size = 0x80000, scoped, tag = 'input window, operand 3, single buffered']
    #allocation9 [shape = 's32[1]{0}', space=sflag, size = 0x4, scoped, tag = 'scoped memory for tpu_custom_call.1']
    #allocation10 [shape = 'u8[131072]{0}', space=vmem, size = 0x20000, scoped, tag = 'input window, operand 5, single buffered']
    #allocation11 [shape = 'u8[8192]{0}', space=vmem, size = 0x2000, scoped, tag = 'output window, operand 0, single buffered']
    #allocation12 [shape = 'u8[16384]{0}', space=vmem, size = 0x4000, scoped, tag = 'output window, operand 1, single buffered']
    #allocation13 [shape = 's32[1]{0}', space=sflag, size = 0x4, scoped, tag = 'scoped memory for tpu_custom_call.1']
    %14 = vsyncpa [#allocation3], 0
    %15 = vsyncpa [#allocation6], 0
    %16 = vsyncpa [#allocation9], 0
    %17 = vsyncpa [#allocation4], 0
    %18 = vsyncpa [#allocation13], 0
    // Predicated region
    $region2: #{tpu_custom_call.1} parent=1 // pred_check
      _
    $region3: #{tpu_custom_call.1} parent=1 // pred_check_branch
      %20 = sbr.rel (0) target = $region5
    $region4: #{tpu_custom_call.1} parent=1 // pred_region
      %s22 = ssub.s32 1792, 1792
      %23 = vsyncadd [#allocation3], %s22
      %s24 = sshll.u32 [#allocation2], 4
      %s25 = int_to_ptr.vmem [resolvable:$true] %s24
      %30 = dma.hbm_to_vmem [thread:$0]  %s0, 1792, %s25, [#allocation3], 896, 896, 56
    $region5: #{tpu_custom_call.1} parent=1 // pred_fallthru
      _
    // Predicated region
    $region6: #{tpu_custom_call.1} parent=1 // pred_check
      _
    $region7: #{tpu_custom_call.1} parent=1 // pred_check_branch
      %32 = sbr.rel (0) target = $region9
    $region8: #{tpu_custom_call.1} parent=1 // pred_region
      %s34 = ssub.s32 25088, 25088
      %35 = vsyncadd [#allocation6], %s34
      %s36 = sshll.u32 [#allocation5], 4
      %s37 = int_to_ptr.vmem [resolvable:$true] %s36
      %42 = dma.hbm_to_vmem [thread:$0]  %s1, 25088, %s37, [#allocation6], 256, 256, 16
    $region9: #{tpu_custom_call.1} parent=1 // pred_fallthru
      _
    // Predicated region
    $region10: #{tpu_custom_call.1} parent=1 // pred_check
      _
    $region11: #{tpu_custom_call.1} parent=1 // pred_check_branch
      %44 = sbr.rel (0) target = $region13
    $region12: #{tpu_custom_call.1} parent=1 // pred_region
      %s46 = ssub.s32 64, 64
      %47 = vsyncadd [#allocation6], %s46
      %s49 = sshll.u32 [#allocation7], 4
      %s50 = int_to_ptr.vmem [resolvable:$true] %s49
      %52 = dma.hbm_to_vmem [thread:$0]  %s2, 64, %s50, [#allocation6]
    $region13: #{tpu_custom_call.1} parent=1 // pred_fallthru
      _
    // Predicated region
    $region14: #{tpu_custom_call.1} parent=1 // pred_check
      _
    $region15: #{tpu_custom_call.1} parent=1 // pred_check_branch
      %54 = sbr.rel (0) target = $region17
    $region16: #{tpu_custom_call.1} parent=1 // pred_region
      %s56 = ssub.s32 16384, 16384
      %57 = vsyncadd [#allocation9], %s56
      %s58 = sshll.u32 [#allocation8], 4
      %s59 = int_to_ptr.vmem [resolvable:$true] %s58
      %64 = dma.hbm_to_vmem [thread:$0]  %s3, 16384, %s59, [#allocation9], 256, 256, 16
    $region17: #{tpu_custom_call.1} parent=1 // pred_fallthru
      _
    // Predicated region
    $region18: #{tpu_custom_call.1} parent=1 // pred_check
      _
    $region19: #{tpu_custom_call.1} parent=1 // pred_check_branch
      %66 = sbr.rel (0) target = $region21
    $region20: #{tpu_custom_call.1} parent=1 // pred_region
      _
    $region21: #{tpu_custom_call.1} parent=1 // pred_fallthru
      _
    // Predicated region
    $region22: #{tpu_custom_call.1} parent=1 // pred_check
      _
    $region23: #{tpu_custom_call.1} parent=1 // pred_check_branch
      %68 = sbr.rel (0) target = $region25
    $region24: #{tpu_custom_call.1} parent=1 // pred_region
      %s70 = ssub.s32 4096, 4096
      %71 = vsyncadd [#allocation9], %s70
      %s72 = sshll.u32 [#allocation10], 4
      %s73 = int_to_ptr.vmem [resolvable:$true] %s72
      %78 = dma.hbm_to_vmem [thread:$0]  %s5, 4096, %s73, [#allocation9], 64, 64, 4
    $region25: #{tpu_custom_call.1} parent=1 // pred_fallthru
      _
    // Predicated region
    $region26: #{tpu_custom_call.1} parent=1 // pred_check
      _
    $region27: #{tpu_custom_call.1} parent=1 // pred_check_branch
      %80 = sbr.rel (0) target = $region29
    $region28: #{tpu_custom_call.1} parent=1 // pred_region
      _
    $region29: #{tpu_custom_call.1} parent=1 // pred_fallthru
      _
    // Predicated region
    $region30: #{tpu_custom_call.1} parent=1 // pred_check
      _
    $region31: #{tpu_custom_call.1} parent=1 // pred_check_branch
      %82 = sbr.rel (0) target = $region33
    $region32: #{tpu_custom_call.1} parent=1 // pred_region
      %83 = dma.done [#allocation3], 1792
    $region33: #{tpu_custom_call.1} parent=1 // pred_fallthru
      _
    // Predicated region
    $region34: #{tpu_custom_call.1} parent=1 // pred_check
      _
    $region35: #{tpu_custom_call.1} parent=1 // pred_check_branch
      %85 = sbr.rel (0) target = $region37
    $region36: #{tpu_custom_call.1} parent=1 // pred_region
      %86 = dma.done [#allocation6], 25088
    $region37: #{tpu_custom_call.1} parent=1 // pred_fallthru
      _
    // Predicated region
    $region38: #{tpu_custom_call.1} parent=1 // pred_check
      _
    $region39: #{tpu_custom_call.1} parent=1 // pred_check_branch
      %88 = sbr.rel (0) target = $region41
    $region40: #{tpu_custom_call.1} parent=1 // pred_region
      %89 = dma.done [#allocation6], 64
    $region41: #{tpu_custom_call.1} parent=1 // pred_fallthru
      _
    // Predicated region
    $region42: #{tpu_custom_call.1} parent=1 // pred_check
      _
    $region43: #{tpu_custom_call.1} parent=1 // pred_check_branch
      %91 = sbr.rel (0) target = $region45
    $region44: #{tpu_custom_call.1} parent=1 // pred_region
      %92 = dma.done [#allocation9], 16384
    $region45: #{tpu_custom_call.1} parent=1 // pred_fallthru
      _
    // Predicated region
    $region46: #{tpu_custom_call.1} parent=1 // pred_check
      _
    $region47: #{tpu_custom_call.1} parent=1 // pred_check_branch
      %94 = sbr.rel (0) target = $region49
    $region48: #{tpu_custom_call.1} parent=1 // pred_region
      %95 = dma.done [#allocation9], 4096
    $region49: #{tpu_custom_call.1} parent=1 // pred_fallthru
      _
    %v97 = vld [vmem:[#allocation2] sm:$0xff]
    %v98 = vld [vmem:[#allocation2 + $0x8] sm:$0xff]
    %v99 = vld [vmem:[#allocation2 + $0x10] sm:$0xff]
    %v100 = vld [vmem:[#allocation2 + $0x18] sm:$0xff]
    %v101 = vld [vmem:[#allocation2 + $0x20] sm:$0xff]
    %v102 = vld [vmem:[#allocation2 + $0x28] sm:$0xff]
    %v103 = vld [vmem:[#allocation2 + $0x30] sm:$0xff]
    %v104 = vld [vmem:[#allocation2 + $0x38] sm:$0xff]
    %v105 = vld [vmem:[#allocation2 + $0x40] sm:$0xff]
    %v106 = vld [vmem:[#allocation2 + $0x48] sm:$0xff]
    %v107 = vld [vmem:[#allocation2 + $0x50] sm:$0xff]
    %v108 = vld [vmem:[#allocation2 + $0x58] sm:$0xff]
    %v109 = vld [vmem:[#allocation2 + $0x60] sm:$0xff]
    %v110 = vld [vmem:[#allocation2 + $0x68] sm:$0xff]
    %v111 = vpack.c.bf16 %v104, %v97
    %v112 = vpack.c.bf16 %v105, %v98
    %v113 = vpack.c.bf16 %v106, %v99
    %v114 = vpack.c.bf16 %v107, %v100
    %v115 = vpack.c.bf16 %v108, %v101
    %v116 = vpack.c.bf16 %v109, %v102
    %v117 = vpack.c.bf16 %v110, %v103
    %v118 = vld [vmem:[#allocation5] sm:$0xff]
    %v119 = vld [vmem:[#allocation5 + $0x8] sm:$0xff]
    %v120 = vld [vmem:[#allocation5 + $0x10] sm:$0xff]
    %v121 = vld [vmem:[#allocation5 + $0x18] sm:$0xff]
    %v122 = vld [vmem:[#allocation5 + $0x20] sm:$0xff]
    %v123 = vld [vmem:[#allocation5 + $0x28] sm:$0xff]
    %v124 = vld [vmem:[#allocation5 + $0x30] sm:$0xff]
    %v125 = vld [vmem:[#allocation5 + $0x38] sm:$0xff]
    %v126 = vld [vmem:[#allocation5 + $0x40] sm:$0xff]
    %v127 = vld [vmem:[#allocation5 + $0x48] sm:$0xff]
    %v128 = vld [vmem:[#allocation5 + $0x50] sm:$0xff]
    %v129 = vld [vmem:[#allocation5 + $0x58] sm:$0xff]
    %v130 = vld [vmem:[#allocation5 + $0x60] sm:$0xff]
    %v131 = vld [vmem:[#allocation5 + $0x68] sm:$0xff]
    %v132 = vld [vmem:[#allocation5 + $0x70] sm:$0xff]
    %v133 = vld [vmem:[#allocation5 + $0x78] sm:$0xff]
    %v134 = vld [vmem:[#allocation5 + $0x80] sm:$0xff]
    %v135 = vld [vmem:[#allocation5 + $0x88] sm:$0xff]
    %v136 = vld [vmem:[#allocation5 + $0x90] sm:$0xff]
    %v137 = vld [vmem:[#allocation5 + $0x98] sm:$0xff]
    %v138 = vld [vmem:[#allocation5 + $0xa0] sm:$0xff]
    %v139 = vld [vmem:[#allocation5 + $0xa8] sm:$0xff]
    %v140 = vld [vmem:[#allocation5 + $0xb0] sm:$0xff]
    %v141 = vld [vmem:[#allocation5 + $0xb8] sm:$0xff]
    %v142 = vld [vmem:[#allocation5 + $0xc0] sm:$0xff]
    %v143 = vld [vmem:[#allocation5 + $0xc8] sm:$0xff]
    %v144 = vld [vmem:[#allocation5 + $0xd0] sm:$0xff]
    %v145 = vld [vmem:[#allocation5 + $0xd8] sm:$0xff]
    %v146 = vld [vmem:[#allocation5 + $0xe0] sm:$0xff]
    %v147 = vld [vmem:[#allocation5 + $0xe8] sm:$0xff]
    %v148 = vld [vmem:[#allocation5 + $0xf0] sm:$0xff]
    %v149 = vld [vmem:[#allocation5 + $0xf8] sm:$0xff]
    %v150 = vld [vmem:[#allocation5 + $0x100] sm:$0xff]
    %v151 = vld [vmem:[#allocation5 + $0x108] sm:$0xff]
    %v152 = vld [vmem:[#allocation5 + $0x110] sm:$0xff]
    %v153 = vld [vmem:[#allocation5 + $0x118] sm:$0xff]
    %v154 = vld [vmem:[#allocation5 + $0x120] sm:$0xff]
    %v155 = vld [vmem:[#allocation5 + $0x128] sm:$0xff]
    %v156 = vld [vmem:[#allocation5 + $0x130] sm:$0xff]
    %v157 = vld [vmem:[#allocation5 + $0x138] sm:$0xff]
    %v158 = vld [vmem:[#allocation5 + $0x140] sm:$0xff]
    %v159 = vld [vmem:[#allocation5 + $0x148] sm:$0xff]
    %v160 = vld [vmem:[#allocation5 + $0x150] sm:$0xff]
    %v161 = vld [vmem:[#allocation5 + $0x158] sm:$0xff]
    %v162 = vld [vmem:[#allocation5 + $0x160] sm:$0xff]
    %v163 = vld [vmem:[#allocation5 + $0x168] sm:$0xff]
    %v164 = vld [vmem:[#allocation5 + $0x170] sm:$0xff]
    %v165 = vld [vmem:[#allocation5 + $0x178] sm:$0xff]
    %v166 = vld [vmem:[#allocation5 + $0x180] sm:$0xff]
    %v167 = vld [vmem:[#allocation5 + $0x188] sm:$0xff]
    %v168 = vld [vmem:[#allocation5 + $0x190] sm:$0xff]
    %v169 = vld [vmem:[#allocation5 + $0x198] sm:$0xff]
    %v170 = vld [vmem:[#allocation5 + $0x1a0] sm:$0xff]
    %v171 = vld [vmem:[#allocation5 + $0x1a8] sm:$0xff]
    %v172 = vld [vmem:[#allocation5 + $0x1b0] sm:$0xff]
    %v173 = vld [vmem:[#allocation5 + $0x1b8] sm:$0xff]
    %v174 = vld [vmem:[#allocation5 + $0x1c0] sm:$0xff]
    %v175 = vld [vmem:[#allocation5 + $0x1c8] sm:$0xff]
    %v176 = vld [vmem:[#allocation5 + $0x1d0] sm:$0xff]
    %v177 = vld [vmem:[#allocation5 + $0x1d8] sm:$0xff]
    %v178 = vld [vmem:[#allocation5 + $0x1e0] sm:$0xff]
    %v179 = vld [vmem:[#allocation5 + $0x1e8] sm:$0xff]
    %v180 = vld [vmem:[#allocation5 + $0x1f0] sm:$0xff]
    %v181 = vld [vmem:[#allocation5 + $0x1f8] sm:$0xff]
    %v182 = vld [vmem:[#allocation5 + $0x200] sm:$0xff]
    %v183 = vld [vmem:[#allocation5 + $0x208] sm:$0xff]
    %v184 = vld [vmem:[#allocation5 + $0x210] sm:$0xff]
    %v185 = vld [vmem:[#allocation5 + $0x218] sm:$0xff]
    %v186 = vld [vmem:[#allocation5 + $0x220] sm:$0xff]
    %v187 = vld [vmem:[#allocation5 + $0x228] sm:$0xff]
    %v188 = vld [vmem:[#allocation5 + $0x230] sm:$0xff]
    %v189 = vld [vmem:[#allocation5 + $0x238] sm:$0xff]
    %v190 = vld [vmem:[#allocation5 + $0x240] sm:$0xff]
    %v191 = vld [vmem:[#allocation5 + $0x248] sm:$0xff]
    %v192 = vld [vmem:[#allocation5 + $0x250] sm:$0xff]
    %v193 = vld [vmem:[#allocation5 + $0x258] sm:$0xff]
    %v194 = vld [vmem:[#allocation5 + $0x260] sm:$0xff]
    %v195 = vld [vmem:[#allocation5 + $0x268] sm:$0xff]
    %v196 = vld [vmem:[#allocation5 + $0x270] sm:$0xff]
    %v197 = vld [vmem:[#allocation5 + $0x278] sm:$0xff]
    %v198 = vld [vmem:[#allocation5 + $0x280] sm:$0xff]
    %v199 = vld [vmem:[#allocation5 + $0x288] sm:$0xff]
    %v200 = vld [vmem:[#allocation5 + $0x290] sm:$0xff]
    %v201 = vld [vmem:[#allocation5 + $0x298] sm:$0xff]
    %v202 = vld [vmem:[#allocation5 + $0x2a0] sm:$0xff]
    %v203 = vld [vmem:[#allocation5 + $0x2a8] sm:$0xff]
    %v204 = vld [vmem:[#allocation5 + $0x2b0] sm:$0xff]
    %v205 = vld [vmem:[#allocation5 + $0x2b8] sm:$0xff]
    %v206 = vld [vmem:[#allocation5 + $0x2c0] sm:$0xff]
    %v207 = vld [vmem:[#allocation5 + $0x2c8] sm:$0xff]
    %v208 = vld [vmem:[#allocation5 + $0x2d0] sm:$0xff]
    %v209 = vld [vmem:[#allocation5 + $0x2d8] sm:$0xff]
    %v210 = vld [vmem:[#allocation5 + $0x2e0] sm:$0xff]
    %v211 = vld [vmem:[#allocation5 + $0x2e8] sm:$0xff]
    %v212 = vld [vmem:[#allocation5 + $0x2f0] sm:$0xff]
    %v213 = vld [vmem:[#allocation5 + $0x2f8] sm:$0xff]
    %v214 = vld [vmem:[#allocation5 + $0x300] sm:$0xff]
    %v215 = vld [vmem:[#allocation5 + $0x308] sm:$0xff]
    %v216 = vld [vmem:[#allocation5 + $0x310] sm:$0xff]
    %v217 = vld [vmem:[#allocation5 + $0x318] sm:$0xff]
    %v218 = vld [vmem:[#allocation5 + $0x320] sm:$0xff]
    %v219 = vld [vmem:[#allocation5 + $0x328] sm:$0xff]
    %v220 = vld [vmem:[#allocation5 + $0x330] sm:$0xff]
    %v221 = vld [vmem:[#allocation5 + $0x338] sm:$0xff]
    %v222 = vld [vmem:[#allocation5 + $0x340] sm:$0xff]
    %v223 = vld [vmem:[#allocation5 + $0x348] sm:$0xff]
    %v224 = vld [vmem:[#allocation5 + $0x350] sm:$0xff]
    %v225 = vld [vmem:[#allocation5 + $0x358] sm:$0xff]
    %v226 = vld [vmem:[#allocation5 + $0x360] sm:$0xff]
    %v227 = vld [vmem:[#allocation5 + $0x368] sm:$0xff]
    %v228 = vld [vmem:[#allocation5 + $0x370] sm:$0xff]
    %v229 = vld [vmem:[#allocation5 + $0x378] sm:$0xff]
    %v230 = vld [vmem:[#allocation5 + $0x380] sm:$0xff]
    %v231 = vld [vmem:[#allocation5 + $0x388] sm:$0xff]
    %v232 = vld [vmem:[#allocation5 + $0x390] sm:$0xff]
    %v233 = vld [vmem:[#allocation5 + $0x398] sm:$0xff]
    %v234 = vld [vmem:[#allocation5 + $0x3a0] sm:$0xff]
    %v235 = vld [vmem:[#allocation5 + $0x3a8] sm:$0xff]
    %v236 = vld [vmem:[#allocation5 + $0x3b0] sm:$0xff]
    %v237 = vld [vmem:[#allocation5 + $0x3b8] sm:$0xff]
    %v238 = vld [vmem:[#allocation5 + $0x3c0] sm:$0xff]
    %v239 = vld [vmem:[#allocation5 + $0x3c8] sm:$0xff]
    %v240 = vld [vmem:[#allocation5 + $0x3d0] sm:$0xff]
    %v241 = vld [vmem:[#allocation5 + $0x3d8] sm:$0xff]
    %v242 = vld [vmem:[#allocation5 + $0x3e0] sm:$0xff]
    %v243 = vld [vmem:[#allocation5 + $0x3e8] sm:$0xff]
    %v244 = vld [vmem:[#allocation5 + $0x3f0] sm:$0xff]
    %v245 = vld [vmem:[#allocation5 + $0x3f8] sm:$0xff]
    %v246 = vld [vmem:[#allocation5 + $0x400] sm:$0xff]
    %v247 = vld [vmem:[#allocation5 + $0x408] sm:$0xff]
    %v248 = vld [vmem:[#allocation5 + $0x410] sm:$0xff]
    %v249 = vld [vmem:[#allocation5 + $0x418] sm:$0xff]
    %v250 = vld [vmem:[#allocation5 + $0x420] sm:$0xff]
    %v251 = vld [vmem:[#allocation5 + $0x428] sm:$0xff]
    %v252 = vld [vmem:[#allocation5 + $0x430] sm:$0xff]
    %v253 = vld [vmem:[#allocation5 + $0x438] sm:$0xff]
    %v254 = vld [vmem:[#allocation5 + $0x440] sm:$0xff]
    %v255 = vld [vmem:[#allocation5 + $0x448] sm:$0xff]
    %v256 = vld [vmem:[#allocation5 + $0x450] sm:$0xff]
    %v257 = vld [vmem:[#allocation5 + $0x458] sm:$0xff]
    %v258 = vld [vmem:[#allocation5 + $0x460] sm:$0xff]
    %v259 = vld [vmem:[#allocation5 + $0x468] sm:$0xff]
    %v260 = vld [vmem:[#allocation5 + $0x470] sm:$0xff]
    %v261 = vld [vmem:[#allocation5 + $0x478] sm:$0xff]
    %v262 = vld [vmem:[#allocation5 + $0x480] sm:$0xff]
    %v263 = vld [vmem:[#allocation5 + $0x488] sm:$0xff]
    %v264 = vld [vmem:[#allocation5 + $0x490] sm:$0xff]
    %v265 = vld [vmem:[#allocation5 + $0x498] sm:$0xff]
    %v266 = vld [vmem:[#allocation5 + $0x4a0] sm:$0xff]
    %v267 = vld [vmem:[#allocation5 + $0x4a8] sm:$0xff]
    %v268 = vld [vmem:[#allocation5 + $0x4b0] sm:$0xff]
    %v269 = vld [vmem:[#allocation5 + $0x4b8] sm:$0xff]
    %v270 = vld [vmem:[#allocation5 + $0x4c0] sm:$0xff]
    %v271 = vld [vmem:[#allocation5 + $0x4c8] sm:$0xff]
    %v272 = vld [vmem:[#allocation5 + $0x4d0] sm:$0xff]
    %v273 = vld [vmem:[#allocation5 + $0x4d8] sm:$0xff]
    %v274 = vld [vmem:[#allocation5 + $0x4e0] sm:$0xff]
    %v275 = vld [vmem:[#allocation5 + $0x4e8] sm:$0xff]
    %v276 = vld [vmem:[#allocation5 + $0x4f0] sm:$0xff]
    %v277 = vld [vmem:[#allocation5 + $0x4f8] sm:$0xff]
    %v278 = vld [vmem:[#allocation5 + $0x500] sm:$0xff]
    %v279 = vld [vmem:[#allocation5 + $0x508] sm:$0xff]
    %v280 = vld [vmem:[#allocation5 + $0x510] sm:$0xff]
    %v281 = vld [vmem:[#allocation5 + $0x518] sm:$0xff]
    %v282 = vld [vmem:[#allocation5 + $0x520] sm:$0xff]
    %v283 = vld [vmem:[#allocation5 + $0x528] sm:$0xff]
    %v284 = vld [vmem:[#allocation5 + $0x530] sm:$0xff]
    %v285 = vld [vmem:[#allocation5 + $0x538] sm:$0xff]
    %v286 = vld [vmem:[#allocation5 + $0x540] sm:$0xff]
    %v287 = vld [vmem:[#allocation5 + $0x548] sm:$0xff]
    %v288 = vld [vmem:[#allocation5 + $0x550] sm:$0xff]
    %v289 = vld [vmem:[#allocation5 + $0x558] sm:$0xff]
    %v290 = vld [vmem:[#allocation5 + $0x560] sm:$0xff]
    %v291 = vld [vmem:[#allocation5 + $0x568] sm:$0xff]
    %v292 = vld [vmem:[#allocation5 + $0x570] sm:$0xff]
    %v293 = vld [vmem:[#allocation5 + $0x578] sm:$0xff]
    %v294 = vld [vmem:[#allocation5 + $0x580] sm:$0xff]
    %v295 = vld [vmem:[#allocation5 + $0x588] sm:$0xff]
    %v296 = vld [vmem:[#allocation5 + $0x590] sm:$0xff]
    %v297 = vld [vmem:[#allocation5 + $0x598] sm:$0xff]
    %v298 = vld [vmem:[#allocation5 + $0x5a0] sm:$0xff]
    %v299 = vld [vmem:[#allocation5 + $0x5a8] sm:$0xff]
    %v300 = vld [vmem:[#allocation5 + $0x5b0] sm:$0xff]
    %v301 = vld [vmem:[#allocation5 + $0x5b8] sm:$0xff]
    %v302 = vld [vmem:[#allocation5 + $0x5c0] sm:$0xff]
    %v303 = vld [vmem:[#allocation5 + $0x5c8] sm:$0xff]
    %v304 = vld [vmem:[#allocation5 + $0x5d0] sm:$0xff]
    %v305 = vld [vmem:[#allocation5 + $0x5d8] sm:$0xff]
    %v306 = vld [vmem:[#allocation5 + $0x5e0] sm:$0xff]
    %v307 = vld [vmem:[#allocation5 + $0x5e8] sm:$0xff]
    %v308 = vld [vmem:[#allocation5 + $0x5f0] sm:$0xff]
    %v309 = vld [vmem:[#allocation5 + $0x5f8] sm:$0xff]
    %v310 = vld [vmem:[#allocation5 + $0x600] sm:$0xff]
    %v311 = vld [vmem:[#allocation5 + $0x608] sm:$0xff]
    %v312 = vld [vmem:[#allocation5 + $0x610] sm:$0xff]
    %v313 = vld [vmem:[#allocation5 + $0x618] sm:$0xff]
    %v314 = vld [vmem:[#allocation7] sm:$0xf]
    %v316 = vlaneseq
    %v317 = vshrl.u32 %v316, 7
    %v318 = vsub.s32 0, %v317
    %v319 = vrot.slane %v314, %v318
    %v320 = vlaneseq
    %v321 = vshrl.u32 %v320, 7
    %v322 = vsub.s32 1, %v321
    %v323 = vrot.slane %v314, %v322
    %v324 = vlaneseq
    %v325 = vshrl.u32 %v324, 7
    %v326 = vsub.s32 2, %v325
    %v327 = vrot.slane %v314, %v326
    %v328 = vlaneseq
    %v329 = vshrl.u32 %v328, 7
    %v330 = vsub.s32 3, %v329
    %v331 = vrot.slane %v314, %v330
    %v532 = vunpack.c.l.b16 %v118
    %v533 = vunpack.c.h.b16 %v118
    %v534 = vunpack.c.l.b16 %v119
    %v535 = vunpack.c.h.b16 %v119
    %v536 = vunpack.c.l.b16 %v120
    %v537 = vunpack.c.h.b16 %v120
    %v538 = vunpack.c.l.b16 %v121
    %v539 = vunpack.c.h.b16 %v121
    %v540 = vunpack.c.l.b16 %v122
    %v541 = vunpack.c.h.b16 %v122
    %v542 = vunpack.c.l.b16 %v123
    %v543 = vunpack.c.h.b16 %v123
    %v544 = vunpack.c.l.b16 %v124
    %v545 = vunpack.c.h.b16 %v124
    %v546 = vunpack.c.l.b16 %v125
    %v547 = vunpack.c.h.b16 %v125
    %v548 = vunpack.c.l.b16 %v126
    %v549 = vunpack.c.h.b16 %v126
    %v550 = vunpack.c.l.b16 %v127
    %v551 = vunpack.c.h.b16 %v127
    %v552 = vunpack.c.l.b16 %v128
    %v553 = vunpack.c.h.b16 %v128
    %v554 = vunpack.c.l.b16 %v129
    %v555 = vunpack.c.h.b16 %v129
    %v556 = vunpack.c.l.b16 %v130
    %v557 = vunpack.c.h.b16 %v130
    %v558 = vunpack.c.l.b16 %v131
    %v559 = vunpack.c.h.b16 %v131
    %v560 = vunpack.c.l.b16 %v132
    %v561 = vunpack.c.h.b16 %v132
    %v562 = vunpack.c.l.b16 %v133
    %v563 = vunpack.c.h.b16 %v133
    %v564 = vunpack.c.l.b16 %v134
    %v565 = vunpack.c.h.b16 %v134
    %v566 = vunpack.c.l.b16 %v135
    %v567 = vunpack.c.h.b16 %v135
    %v568 = vunpack.c.l.b16 %v136
    %v569 = vunpack.c.h.b16 %v136
    %v570 = vunpack.c.l.b16 %v137
    %v571 = vunpack.c.h.b16 %v137
    %v572 = vunpack.c.l.b16 %v138
    %v573 = vunpack.c.h.b16 %v138
    %v574 = vunpack.c.l.b16 %v139
    %v575 = vunpack.c.h.b16 %v139
    %v576 = vunpack.c.l.b16 %v140
    %v577 = vunpack.c.h.b16 %v140
    %v578 = vunpack.c.l.b16 %v141
    %v579 = vunpack.c.h.b16 %v141
    %v580 = vunpack.c.l.b16 %v142
    %v581 = vunpack.c.h.b16 %v142
    %v582 = vunpack.c.l.b16 %v143
    %v583 = vunpack.c.h.b16 %v143
    %v584 = vunpack.c.l.b16 %v144
    %v585 = vunpack.c.h.b16 %v144
    %v586 = vunpack.c.l.b16 %v145
    %v587 = vunpack.c.h.b16 %v145
    %v588 = vunpack.c.l.b16 %v146
    %v589 = vunpack.c.h.b16 %v146
    %v590 = vunpack.c.l.b16 %v147
    %v591 = vunpack.c.h.b16 %v147
    %v592 = vunpack.c.l.b16 %v148
    %v593 = vunpack.c.h.b16 %v148
    %v594 = vunpack.c.l.b16 %v149
    %v595 = vunpack.c.h.b16 %v149
    %v596 = vunpack.c.l.b16 %v150
    %v597 = vunpack.c.h.b16 %v150
    %v598 = vunpack.c.l.b16 %v151
    %v599 = vunpack.c.h.b16 %v151
    %v600 = vunpack.c.l.b16 %v152
    %v601 = vunpack.c.h.b16 %v152
    %v602 = vunpack.c.l.b16 %v153
    %v603 = vunpack.c.h.b16 %v153
    %v604 = vunpack.c.l.b16 %v154
    %v605 = vunpack.c.h.b16 %v154
    %v606 = vunpack.c.l.b16 %v155
    %v607 = vunpack.c.h.b16 %v155
    %v608 = vunpack.c.l.b16 %v156
    %v609 = vunpack.c.h.b16 %v156
    %v610 = vunpack.c.l.b16 %v157
    %v611 = vunpack.c.h.b16 %v157
    %v612 = vunpack.c.l.b16 %v158
    %v613 = vunpack.c.h.b16 %v158
    %v614 = vunpack.c.l.b16 %v159
    %v615 = vunpack.c.h.b16 %v159
    %v616 = vunpack.c.l.b16 %v160
    %v617 = vunpack.c.h.b16 %v160
    %v618 = vunpack.c.l.b16 %v161
    %v619 = vunpack.c.h.b16 %v161
    %v620 = vunpack.c.l.b16 %v162
    %v621 = vunpack.c.h.b16 %v162
    %v622 = vunpack.c.l.b16 %v163
    %v623 = vunpack.c.h.b16 %v163
    %v624 = vunpack.c.l.b16 %v164
    %v625 = vunpack.c.h.b16 %v164
    %v626 = vunpack.c.l.b16 %v165
    %v627 = vunpack.c.h.b16 %v165
    %v628 = vunpack.c.l.b16 %v166
    %v629 = vunpack.c.h.b16 %v166
    %v630 = vunpack.c.l.b16 %v167
    %v631 = vunpack.c.h.b16 %v167
    %v632 = vunpack.c.l.b16 %v168
    %v633 = vunpack.c.h.b16 %v168
    %v634 = vunpack.c.l.b16 %v169
    %v635 = vunpack.c.h.b16 %v169
    %v636 = vunpack.c.l.b16 %v170
    %v637 = vunpack.c.h.b16 %v170
    %v638 = vunpack.c.l.b16 %v171
    %v639 = vunpack.c.h.b16 %v171
    %v640 = vunpack.c.l.b16 %v172
    %v641 = vunpack.c.h.b16 %v172
    %v642 = vunpack.c.l.b16 %v173
    %v643 = vunpack.c.h.b16 %v173
    %v644 = vunpack.c.l.b16 %v174
    %v645 = vunpack.c.h.b16 %v174
    %v646 = vunpack.c.l.b16 %v175
    %v647 = vunpack.c.h.b16 %v175
    %v648 = vunpack.c.l.b16 %v176
    %v649 = vunpack.c.h.b16 %v176
    %v650 = vunpack.c.l.b16 %v177
    %v651 = vunpack.c.h.b16 %v177
    %v652 = vunpack.c.l.b16 %v178
    %v653 = vunpack.c.h.b16 %v178
    %v654 = vunpack.c.l.b16 %v179
    %v655 = vunpack.c.h.b16 %v179
    %v656 = vunpack.c.l.b16 %v180
    %v657 = vunpack.c.h.b16 %v180
    %v658 = vunpack.c.l.b16 %v181
    %v659 = vunpack.c.h.b16 %v181
    %v660 = vunpack.c.l.b16 %v182
    %v661 = vunpack.c.h.b16 %v182
    %v662 = vunpack.c.l.b16 %v183
    %v663 = vunpack.c.h.b16 %v183
    %v664 = vunpack.c.l.b16 %v184
    %v665 = vunpack.c.h.b16 %v184
    %v666 = vunpack.c.l.b16 %v185
    %v667 = vunpack.c.h.b16 %v185
    %v668 = vunpack.c.l.b16 %v186
    %v669 = vunpack.c.h.b16 %v186
    %v670 = vunpack.c.l.b16 %v187
    %v671 = vunpack.c.h.b16 %v187
    %v672 = vunpack.c.l.b16 %v188
    %v673 = vunpack.c.h.b16 %v188
    %v674 = vunpack.c.l.b16 %v189
    %v675 = vunpack.c.h.b16 %v189
    %v676 = vunpack.c.l.b16 %v190
    %v677 = vunpack.c.h.b16 %v190
    %v678 = vunpack.c.l.b16 %v191
    %v679 = vunpack.c.h.b16 %v191
    %v680 = vunpack.c.l.b16 %v192
    %v681 = vunpack.c.h.b16 %v192
    %v682 = vunpack.c.l.b16 %v193
    %v683 = vunpack.c.h.b16 %v193
    %v684 = vunpack.c.l.b16 %v194
    %v685 = vunpack.c.h.b16 %v194
    %v686 = vunpack.c.l.b16 %v195
    %v687 = vunpack.c.h.b16 %v195
    %v688 = vunpack.c.l.b16 %v196
    %v689 = vunpack.c.h.b16 %v196
    %v690 = vunpack.c.l.b16 %v197
    %v691 = vunpack.c.h.b16 %v197
    %v692 = vunpack.c.l.b16 %v198
    %v693 = vunpack.c.h.b16 %v198
    %v694 = vunpack.c.l.b16 %v199
    %v695 = vunpack.c.h.b16 %v199
    %v696 = vunpack.c.l.b16 %v200
    %v697 = vunpack.c.h.b16 %v200
    %v698 = vunpack.c.l.b16 %v201
    %v699 = vunpack.c.h.b16 %v201
    %v700 = vunpack.c.l.b16 %v202
    %v701 = vunpack.c.h.b16 %v202
    %v702 = vunpack.c.l.b16 %v203
    %v703 = vunpack.c.h.b16 %v203
    %v704 = vunpack.c.l.b16 %v204
    %v705 = vunpack.c.h.b16 %v204
    %v706 = vunpack.c.l.b16 %v205
    %v707 = vunpack.c.h.b16 %v205
    %v708 = vunpack.c.l.b16 %v206
    %v709 = vunpack.c.h.b16 %v206
    %v710 = vunpack.c.l.b16 %v207
    %v711 = vunpack.c.h.b16 %v207
    %v712 = vunpack.c.l.b16 %v208
    %v713 = vunpack.c.h.b16 %v208
    %v714 = vunpack.c.l.b16 %v209
    %v715 = vunpack.c.h.b16 %v209
    %v716 = vunpack.c.l.b16 %v210
    %v717 = vunpack.c.h.b16 %v210
    %v718 = vunpack.c.l.b16 %v211
    %v719 = vunpack.c.h.b16 %v211
    %v720 = vunpack.c.l.b16 %v212
    %v721 = vunpack.c.h.b16 %v212
    %v722 = vunpack.c.l.b16 %v213
    %v723 = vunpack.c.h.b16 %v213
    %v724 = vunpack.c.l.b16 %v214
    %v725 = vunpack.c.h.b16 %v214
    %v726 = vunpack.c.l.b16 %v215
    %v727 = vunpack.c.h.b16 %v215
    %v728 = vunpack.c.l.b16 %v216
    %v729 = vunpack.c.h.b16 %v216
    %v730 = vunpack.c.l.b16 %v217
    %v731 = vunpack.c.h.b16 %v217
    %v732 = vunpack.c.l.b16 %v218
    %v733 = vunpack.c.h.b16 %v218
    %v734 = vunpack.c.l.b16 %v219
    %v735 = vunpack.c.h.b16 %v219
    %v736 = vunpack.c.l.b16 %v220
    %v737 = vunpack.c.h.b16 %v220
    %v738 = vunpack.c.l.b16 %v221
    %v739 = vunpack.c.h.b16 %v221
    %v740 = vunpack.c.l.b16 %v222
    %v741 = vunpack.c.h.b16 %v222
    %v742 = vunpack.c.l.b16 %v223
    %v743 = vunpack.c.h.b16 %v223
    %v744 = vunpack.c.l.b16 %v224
    %v745 = vunpack.c.h.b16 %v224
    %v746 = vunpack.c.l.b16 %v225
    %v747 = vunpack.c.h.b16 %v225
    %v748 = vunpack.c.l.b16 %v226
    %v749 = vunpack.c.h.b16 %v226
    %v750 = vunpack.c.l.b16 %v227
    %v751 = vunpack.c.h.b16 %v227
    %v752 = vunpack.c.l.b16 %v228
    %v753 = vunpack.c.h.b16 %v228
    %v754 = vunpack.c.l.b16 %v229
    %v755 = vunpack.c.h.b16 %v229
    %v756 = vunpack.c.l.b16 %v230
    %v757 = vunpack.c.h.b16 %v230
    %v758 = vunpack.c.l.b16 %v231
    %v759 = vunpack.c.h.b16 %v231
    %v760 = vunpack.c.l.b16 %v232
    %v761 = vunpack.c.h.b16 %v232
    %v762 = vunpack.c.l.b16 %v233
    %v763 = vunpack.c.h.b16 %v233
    %v764 = vunpack.c.l.b16 %v234
    %v765 = vunpack.c.h.b16 %v234
    %v766 = vunpack.c.l.b16 %v235
    %v767 = vunpack.c.h.b16 %v235
    %v768 = vunpack.c.l.b16 %v236
    %v769 = vunpack.c.h.b16 %v236
    %v770 = vunpack.c.l.b16 %v237
    %v771 = vunpack.c.h.b16 %v237
    %v772 = vunpack.c.l.b16 %v238
    %v773 = vunpack.c.h.b16 %v238
    %v774 = vunpack.c.l.b16 %v239
    %v775 = vunpack.c.h.b16 %v239
    %v776 = vunpack.c.l.b16 %v240
    %v777 = vunpack.c.h.b16 %v240
    %v778 = vunpack.c.l.b16 %v241
    %v779 = vunpack.c.h.b16 %v241
    %v780 = vunpack.c.l.b16 %v242
    %v781 = vunpack.c.h.b16 %v242
    %v782 = vunpack.c.l.b16 %v243
    %v783 = vunpack.c.h.b16 %v243
    %v784 = vunpack.c.l.b16 %v244
    %v785 = vunpack.c.h.b16 %v244
    %v786 = vunpack.c.l.b16 %v245
    %v787 = vunpack.c.h.b16 %v245
    %v788 = vunpack.c.l.b16 %v246
    %v789 = vunpack.c.h.b16 %v246
    %v790 = vunpack.c.l.b16 %v247
    %v791 = vunpack.c.h.b16 %v247
    %v792 = vunpack.c.l.b16 %v248
    %v793 = vunpack.c.h.b16 %v248
    %v794 = vunpack.c.l.b16 %v249
    %v795 = vunpack.c.h.b16 %v249
    %v796 = vunpack.c.l.b16 %v250
    %v797 = vunpack.c.h.b16 %v250
    %v798 = vunpack.c.l.b16 %v251
    %v799 = vunpack.c.h.b16 %v251
    %v800 = vunpack.c.l.b16 %v252
    %v801 = vunpack.c.h.b16 %v252
    %v802 = vunpack.c.l.b16 %v253
    %v803 = vunpack.c.h.b16 %v253
    %v804 = vunpack.c.l.b16 %v254
    %v805 = vunpack.c.h.b16 %v254
    %v806 = vunpack.c.l.b16 %v255
    %v807 = vunpack.c.h.b16 %v255
    %v808 = vunpack.c.l.b16 %v256
    %v809 = vunpack.c.h.b16 %v256
    %v810 = vunpack.c.l.b16 %v257
    %v811 = vunpack.c.h.b16 %v257
    %v812 = vunpack.c.l.b16 %v258
    %v813 = vunpack.c.h.b16 %v258
    %v814 = vunpack.c.l.b16 %v259
    %v815 = vunpack.c.h.b16 %v259
    %v816 = vunpack.c.l.b16 %v260
    %v817 = vunpack.c.h.b16 %v260
    %v818 = vunpack.c.l.b16 %v261
    %v819 = vunpack.c.h.b16 %v261
    %v820 = vunpack.c.l.b16 %v262
    %v821 = vunpack.c.h.b16 %v262
    %v822 = vunpack.c.l.b16 %v263
    %v823 = vunpack.c.h.b16 %v263
    %v824 = vunpack.c.l.b16 %v264
    %v825 = vunpack.c.h.b16 %v264
    %v826 = vunpack.c.l.b16 %v265
    %v827 = vunpack.c.h.b16 %v265
    %v828 = vunpack.c.l.b16 %v266
    %v829 = vunpack.c.h.b16 %v266
    %v830 = vunpack.c.l.b16 %v267
    %v831 = vunpack.c.h.b16 %v267
    %v832 = vunpack.c.l.b16 %v268
    %v833 = vunpack.c.h.b16 %v268
    %v834 = vunpack.c.l.b16 %v269
    %v835 = vunpack.c.h.b16 %v269
    %v836 = vunpack.c.l.b16 %v270
    %v837 = vunpack.c.h.b16 %v270
    %v838 = vunpack.c.l.b16 %v271
    %v839 = vunpack.c.h.b16 %v271
    %v840 = vunpack.c.l.b16 %v272
    %v841 = vunpack.c.h.b16 %v272
    %v842 = vunpack.c.l.b16 %v273
    %v843 = vunpack.c.h.b16 %v273
    %v844 = vunpack.c.l.b16 %v274
    %v845 = vunpack.c.h.b16 %v274
    %v846 = vunpack.c.l.b16 %v275
    %v847 = vunpack.c.h.b16 %v275
    %v848 = vunpack.c.l.b16 %v276
    %v849 = vunpack.c.h.b16 %v276
    %v850 = vunpack.c.l.b16 %v277
    %v851 = vunpack.c.h.b16 %v277
    %v852 = vunpack.c.l.b16 %v278
    %v853 = vunpack.c.h.b16 %v278
    %v854 = vunpack.c.l.b16 %v279
    %v855 = vunpack.c.h.b16 %v279
    %v856 = vunpack.c.l.b16 %v280
    %v857 = vunpack.c.h.b16 %v280
    %v858 = vunpack.c.l.b16 %v281
    %v859 = vunpack.c.h.b16 %v281
    %v860 = vunpack.c.l.b16 %v282
    %v861 = vunpack.c.h.b16 %v282
    %v862 = vunpack.c.l.b16 %v283
    %v863 = vunpack.c.h.b16 %v283
    %v864 = vunpack.c.l.b16 %v284
    %v865 = vunpack.c.h.b16 %v284
    %v866 = vunpack.c.l.b16 %v285
    %v867 = vunpack.c.h.b16 %v285
    %v868 = vunpack.c.l.b16 %v286
    %v869 = vunpack.c.h.b16 %v286
    %v870 = vunpack.c.l.b16 %v287
    %v871 = vunpack.c.h.b16 %v287
    %v872 = vunpack.c.l.b16 %v288
    %v873 = vunpack.c.h.b16 %v288
    %v874 = vunpack.c.l.b16 %v289
    %v875 = vunpack.c.h.b16 %v289
    %v876 = vunpack.c.l.b16 %v290
    %v877 = vunpack.c.h.b16 %v290
    %v878 = vunpack.c.l.b16 %v291
    %v879 = vunpack.c.h.b16 %v291
    %v880 = vunpack.c.l.b16 %v292
    %v881 = vunpack.c.h.b16 %v292
    %v882 = vunpack.c.l.b16 %v293
    %v883 = vunpack.c.h.b16 %v293
    %v884 = vunpack.c.l.b16 %v294
    %v885 = vunpack.c.h.b16 %v294
    %v886 = vunpack.c.l.b16 %v295
    %v887 = vunpack.c.h.b16 %v295
    %v888 = vunpack.c.l.b16 %v296
    %v889 = vunpack.c.h.b16 %v296
    %v890 = vunpack.c.l.b16 %v297
    %v891 = vunpack.c.h.b16 %v297
    %v892 = vunpack.c.l.b16 %v298
    %v893 = vunpack.c.h.b16 %v298
    %v894 = vunpack.c.l.b16 %v299
    %v895 = vunpack.c.h.b16 %v299
    %v896 = vunpack.c.l.b16 %v300
    %v897 = vunpack.c.h.b16 %v300
    %v898 = vunpack.c.l.b16 %v301
    %v899 = vunpack.c.h.b16 %v301
    %v900 = vunpack.c.l.b16 %v302
    %v901 = vunpack.c.h.b16 %v302
    %v902 = vunpack.c.l.b16 %v303
    %v903 = vunpack.c.h.b16 %v303
    %v904 = vunpack.c.l.b16 %v304
    %v905 = vunpack.c.h.b16 %v304
    %v906 = vunpack.c.l.b16 %v305
    %v907 = vunpack.c.h.b16 %v305
    %v908 = vunpack.c.l.b16 %v306
    %v909 = vunpack.c.h.b16 %v306
    %v910 = vunpack.c.l.b16 %v307
    %v911 = vunpack.c.h.b16 %v307
    %v912 = vunpack.c.l.b16 %v308
    %v913 = vunpack.c.h.b16 %v308
    %v914 = vunpack.c.l.b16 %v309
    %v915 = vunpack.c.h.b16 %v309
    %v916 = vunpack.c.l.b16 %v310
    %v917 = vunpack.c.h.b16 %v310
    %v918 = vunpack.c.l.b16 %v311
    %v919 = vunpack.c.h.b16 %v311
    %v920 = vunpack.c.l.b16 %v312
    %v921 = vunpack.c.h.b16 %v312
    %v922 = vunpack.c.l.b16 %v313
    %v923 = vunpack.c.h.b16 %v313
    %v924 = vpack.c.b16 %v536, %v532
    %v925 = vpack.c.b16 %v537, %v533
    %v926 = vpack.c.b16 %v538, %v534
    %v927 = vpack.c.b16 %v539, %v535
    %v928 = vpack.c.b16 %v544, %v540
    %v929 = vpack.c.b16 %v545, %v541
    %v930 = vpack.c.b16 %v546, %v542
    %v931 = vpack.c.b16 %v547, %v543
    %v932 = vpack.c.b16 %v552, %v548
    %v933 = vpack.c.b16 %v553, %v549
    %v934 = vpack.c.b16 %v554, %v550
    %v935 = vpack.c.b16 %v555, %v551
    %v936 = vpack.c.b16 %v560, %v556
    %v937 = vpack.c.b16 %v561, %v557
    %v938 = vpack.c.b16 %v562, %v558
    %v939 = vpack.c.b16 %v563, %v559
    %v940 = vpack.c.b16 %v568, %v564
    %v941 = vpack.c.b16 %v569, %v565
    %v942 = vpack.c.b16 %v570, %v566
    %v943 = vpack.c.b16 %v571, %v567
    %v944 = vpack.c.b16 %v576, %v572
    %v945 = vpack.c.b16 %v577, %v573
    %v946 = vpack.c.b16 %v578, %v574
    %v947 = vpack.c.b16 %v579, %v575
    %v948 = vpack.c.b16 %v584, %v580
    %v949 = vpack.c.b16 %v585, %v581
    %v950 = vpack.c.b16 %v586, %v582
    %v951 = vpack.c.b16 %v587, %v583
    %v952 = vpack.c.b16 %v592, %v588
    %v953 = vpack.c.b16 %v593, %v589
    %v954 = vpack.c.b16 %v594, %v590
    %v955 = vpack.c.b16 %v595, %v591
    %v956 = vpack.c.b16 %v600, %v596
    %v957 = vpack.c.b16 %v601, %v597
    %v958 = vpack.c.b16 %v602, %v598
    %v959 = vpack.c.b16 %v603, %v599
    %v960 = vpack.c.b16 %v608, %v604
    %v961 = vpack.c.b16 %v609, %v605
    %v962 = vpack.c.b16 %v610, %v606
    %v963 = vpack.c.b16 %v611, %v607
    %v964 = vpack.c.b16 %v616, %v612
    %v965 = vpack.c.b16 %v617, %v613
    %v966 = vpack.c.b16 %v618, %v614
    %v967 = vpack.c.b16 %v619, %v615
    %v968 = vpack.c.b16 %v624, %v620
    %v969 = vpack.c.b16 %v625, %v621
    %v970 = vpack.c.b16 %v626, %v622
    %v971 = vpack.c.b16 %v627, %v623
    %v972 = vpack.c.b16 %v632, %v628
    %v973 = vpack.c.b16 %v633, %v629
    %v974 = vpack.c.b16 %v634, %v630
    %v975 = vpack.c.b16 %v635, %v631
    %v976 = vpack.c.b16 %v640, %v636
    %v977 = vpack.c.b16 %v641, %v637
    %v978 = vpack.c.b16 %v642, %v638
    %v979 = vpack.c.b16 %v643, %v639
    %v980 = vpack.c.b16 %v648, %v644
    %v981 = vpack.c.b16 %v649, %v645
    %v982 = vpack.c.b16 %v650, %v646
    %v983 = vpack.c.b16 %v651, %v647
    %v984 = vpack.c.b16 %v656, %v652
    %v985 = vpack.c.b16 %v657, %v653
    %v986 = vpack.c.b16 %v658, %v654
    %v987 = vpack.c.b16 %v659, %v655
    %v988 = vpack.c.b16 %v664, %v660
    %v989 = vpack.c.b16 %v665, %v661
    %v990 = vpack.c.b16 %v666, %v662
    %v991 = vpack.c.b16 %v667, %v663
    %v992 = vpack.c.b16 %v672, %v668
    %v993 = vpack.c.b16 %v673, %v669
    %v994 = vpack.c.b16 %v674, %v670
    %v995 = vpack.c.b16 %v675, %v671
    %v996 = vpack.c.b16 %v680, %v676
    %v997 = vpack.c.b16 %v681, %v677
    %v998 = vpack.c.b16 %v682, %v678
    %v999 = vpack.c.b16 %v683, %v679
    %v1000 = vpack.c.b16 %v688, %v684
    %v1001 = vpack.c.b16 %v689, %v685
    %v1002 = vpack.c.b16 %v690, %v686
    %v1003 = vpack.c.b16 %v691, %v687
    %v1004 = vpack.c.b16 %v696, %v692
    %v1005 = vpack.c.b16 %v697, %v693
    %v1006 = vpack.c.b16 %v698, %v694
    %v1007 = vpack.c.b16 %v699, %v695
    %v1008 = vpack.c.b16 %v704, %v700
    %v1009 = vpack.c.b16 %v705, %v701
    %v1010 = vpack.c.b16 %v706, %v702
    %v1011 = vpack.c.b16 %v707, %v703
    %v1012 = vpack.c.b16 %v712, %v708
    %v1013 = vpack.c.b16 %v713, %v709
    %v1014 = vpack.c.b16 %v714, %v710
    %v1015 = vpack.c.b16 %v715, %v711
    %v1016 = vpack.c.b16 %v720, %v716
    %v1017 = vpack.c.b16 %v721, %v717
    %v1018 = vpack.c.b16 %v722, %v718
    %v1019 = vpack.c.b16 %v723, %v719
    %v1020 = vpack.c.b16 %v728, %v724
    %v1021 = vpack.c.b16 %v729, %v725
    %v1022 = vpack.c.b16 %v730, %v726
    %v1023 = vpack.c.b16 %v731, %v727
    %v1024 = vpack.c.b16 %v736, %v732
    %v1025 = vpack.c.b16 %v737, %v733
    %v1026 = vpack.c.b16 %v738, %v734
    %v1027 = vpack.c.b16 %v739, %v735
    %v1028 = vpack.c.b16 %v744, %v740
    %v1029 = vpack.c.b16 %v745, %v741
    %v1030 = vpack.c.b16 %v746, %v742
    %v1031 = vpack.c.b16 %v747, %v743
    %v1032 = vpack.c.b16 %v752, %v748
    %v1033 = vpack.c.b16 %v753, %v749
    %v1034 = vpack.c.b16 %v754, %v750
    %v1035 = vpack.c.b16 %v755, %v751
    %v1036 = vpack.c.b16 %v760, %v756
    %v1037 = vpack.c.b16 %v761, %v757
    %v1038 = vpack.c.b16 %v762, %v758
    %v1039 = vpack.c.b16 %v763, %v759
    %v1040 = vpack.c.b16 %v768, %v764
    %v1041 = vpack.c.b16 %v769, %v765
    %v1042 = vpack.c.b16 %v770, %v766
    %v1043 = vpack.c.b16 %v771, %v767
    %v1044 = vpack.c.b16 %v776, %v772
    %v1045 = vpack.c.b16 %v777, %v773
    %v1046 = vpack.c.b16 %v778, %v774
    %v1047 = vpack.c.b16 %v779, %v775
    %v1048 = vpack.c.b16 %v784, %v780
    %v1049 = vpack.c.b16 %v785, %v781
    %v1050 = vpack.c.b16 %v786, %v782
    %v1051 = vpack.c.b16 %v787, %v783
    %v1052 = vpack.c.b16 %v792, %v788
    %v1053 = vpack.c.b16 %v793, %v789
    %v1054 = vpack.c.b16 %v794, %v790
    %v1055 = vpack.c.b16 %v795, %v791
    %v1056 = vpack.c.b16 %v800, %v796
    %v1057 = vpack.c.b16 %v801, %v797
    %v1058 = vpack.c.b16 %v802, %v798
    %v1059 = vpack.c.b16 %v803, %v799
    %v1060 = vpack.c.b16 %v808, %v804
    %v1061 = vpack.c.b16 %v809, %v805
    %v1062 = vpack.c.b16 %v810, %v806
    %v1063 = vpack.c.b16 %v811, %v807
    %v1064 = vpack.c.b16 %v816, %v812
    %v1065 = vpack.c.b16 %v817, %v813
    %v1066 = vpack.c.b16 %v818, %v814
    %v1067 = vpack.c.b16 %v819, %v815
    %v1068 = vpack.c.b16 %v824, %v820
    %v1069 = vpack.c.b16 %v825, %v821
    %v1070 = vpack.c.b16 %v826, %v822
    %v1071 = vpack.c.b16 %v827, %v823
    %v1072 = vpack.c.b16 %v832, %v828
    %v1073 = vpack.c.b16 %v833, %v829
    %v1074 = vpack.c.b16 %v834, %v830
    %v1075 = vpack.c.b16 %v835, %v831
    %v1076 = vpack.c.b16 %v840, %v836
    %v1077 = vpack.c.b16 %v841, %v837
    %v1078 = vpack.c.b16 %v842, %v838
    %v1079 = vpack.c.b16 %v843, %v839
    %v1080 = vpack.c.b16 %v848, %v844
    %v1081 = vpack.c.b16 %v849, %v845
    %v1082 = vpack.c.b16 %v850, %v846
    %v1083 = vpack.c.b16 %v851, %v847
    %v1084 = vpack.c.b16 %v856, %v852
    %v1085 = vpack.c.b16 %v857, %v853
    %v1086 = vpack.c.b16 %v858, %v854
    %v1087 = vpack.c.b16 %v859, %v855
    %v1088 = vpack.c.b16 %v864, %v860
    %v1089 = vpack.c.b16 %v865, %v861
    %v1090 = vpack.c.b16 %v866, %v862
    %v1091 = vpack.c.b16 %v867, %v863
    %v1092 = vpack.c.b16 %v872, %v868
    %v1093 = vpack.c.b16 %v873, %v869
    %v1094 = vpack.c.b16 %v874, %v870
    %v1095 = vpack.c.b16 %v875, %v871
    %v1096 = vpack.c.b16 %v880, %v876
    %v1097 = vpack.c.b16 %v881, %v877
    %v1098 = vpack.c.b16 %v882, %v878
    %v1099 = vpack.c.b16 %v883, %v879
    %v1100 = vpack.c.b16 %v888, %v884
    %v1101 = vpack.c.b16 %v889, %v885
    %v1102 = vpack.c.b16 %v890, %v886
    %v1103 = vpack.c.b16 %v891, %v887
    %v1104 = vpack.c.b16 %v896, %v892
    %v1105 = vpack.c.b16 %v897, %v893
    %v1106 = vpack.c.b16 %v898, %v894
    %v1107 = vpack.c.b16 %v899, %v895
    %v1108 = vpack.c.b16 %v904, %v900
    %v1109 = vpack.c.b16 %v905, %v901
    %v1110 = vpack.c.b16 %v906, %v902
    %v1111 = vpack.c.b16 %v907, %v903
    %v1112 = vpack.c.b16 %v912, %v908
    %v1113 = vpack.c.b16 %v913, %v909
    %v1114 = vpack.c.b16 %v914, %v910
    %v1115 = vpack.c.b16 %v915, %v911
    %v1116 = vpack.c.b16 %v920, %v916
    %v1117 = vpack.c.b16 %v921, %v917
    %v1118 = vpack.c.b16 %v922, %v918
    %v1119 = vpack.c.b16 %v923, %v919
    %vm1316 = vcmask 130048
    %v1318 = vsel %vm1316, %v117, 0
    %1320 = vmatprep.subr.bf16.mxu0 %v953
    %1321 = vmatpush1.bf16.msra.mxu0 %v952
    %1322 = vmatprep.subr.bf16.mxu0 %v949
    %1323 = vmatpush1.bf16.msra.mxu0 %v948
    %1324 = vmatprep.subr.bf16.mxu0 %v945
    %1325 = vmatpush1.bf16.msra.mxu0 %v944
    %1326 = vmatprep.subr.bf16.mxu0 %v941
    %1327 = vmatpush1.bf16.msra.mxu0 %v940
    %1328 = vmatprep.subr.bf16.mxu0 %v937
    %1329 = vmatpush1.bf16.msra.mxu0 %v936
    %1330 = vmatprep.subr.bf16.mxu0 %v933
    %1331 = vmatpush1.bf16.msra.mxu0 %v932
    %1332 = vmatprep.subr.bf16.mxu0 %v929
    %1333 = vmatpush1.bf16.msra.mxu0 %v928
    %1334 = vmatprep.subr.bf16.mxu0 %v925
    %1335 = vmatpush1.bf16.msra.mxu0 %v924
    %1336 = vmatprep.subr.bf16.mxu0 %v985
    %1337 = vmatpush2.bf16.msra.mxu0 %v984
    %1338 = vmatprep.subr.bf16.mxu0 %v981
    %1339 = vmatpush2.bf16.msra.mxu0 %v980
    %1340 = vmatprep.subr.bf16.mxu0 %v977
    %1341 = vmatpush2.bf16.msra.mxu0 %v976
    %1342 = vmatprep.subr.bf16.mxu0 %v973
    %1343 = vmatpush2.bf16.msra.mxu0 %v972
    %1344 = vmatprep.subr.bf16.mxu0 %v969
    %1345 = vmatpush2.bf16.msra.mxu0 %v968
    %1346 = vmatprep.subr.bf16.mxu0 %v965
    %1347 = vmatpush2.bf16.msra.mxu0 %v964
    %1348 = vmatprep.subr.bf16.mxu0 %v961
    %1349 = vmatpush2.bf16.msra.mxu0 %v960
    %1350 = vmatprep.subr.bf16.mxu0 %v957
    %1351 = vmatpush2.bf16.msra.mxu0 %v956
    %1352 = vmatprep.mubr.bf16.mxu0 %v112
    %1353 = vmatmul.mubr.bf16.gmra.mxu0 %v111
    %v1354 = vpop.f32.mrf.mxu0
    %v1355 = vadd.f32 %v319, %v1354
    %v1356 = vpop.f32.mrf.mxu0
    %v1357 = vadd.f32 %v323, %v1356
    %v1358 = vpop.f32.mrf.mxu0
    %v1359 = vadd.f32 %v319, %v1358
    %v1360 = vpop.f32.mrf.mxu0
    %v1361 = vadd.f32 %v323, %v1360
    %1362 = vdwg.mxu0
    %1363 = vmatprep.subr.bf16.mxu0 %v1017
    %1364 = vmatpush1.bf16.msra.mxu0 %v1016
    %1365 = vmatprep.subr.bf16.mxu0 %v1013
    %1366 = vmatpush1.bf16.msra.mxu0 %v1012
    %1367 = vmatprep.subr.bf16.mxu0 %v1009
    %1368 = vmatpush1.bf16.msra.mxu0 %v1008
    %1369 = vmatprep.subr.bf16.mxu0 %v1005
    %1370 = vmatpush1.bf16.msra.mxu0 %v1004
    %1371 = vmatprep.subr.bf16.mxu0 %v1001
    %1372 = vmatpush1.bf16.msra.mxu0 %v1000
    %1373 = vmatprep.subr.bf16.mxu0 %v997
    %1374 = vmatpush1.bf16.msra.mxu0 %v996
    %1375 = vmatprep.subr.bf16.mxu0 %v993
    %1376 = vmatpush1.bf16.msra.mxu0 %v992
    %1377 = vmatprep.subr.bf16.mxu0 %v989
    %1378 = vmatpush1.bf16.msra.mxu0 %v988
    %1379 = vmatprep.subr.bf16.mxu0 %v1049
    %1380 = vmatpush2.bf16.msra.mxu0 %v1048
    %1381 = vmatprep.subr.bf16.mxu0 %v1045
    %1382 = vmatpush2.bf16.msra.mxu0 %v1044
    %1383 = vmatprep.subr.bf16.mxu0 %v1041
    %1384 = vmatpush2.bf16.msra.mxu0 %v1040
    %1385 = vmatprep.subr.bf16.mxu0 %v1037
    %1386 = vmatpush2.bf16.msra.mxu0 %v1036
    %1387 = vmatprep.subr.bf16.mxu0 %v1033
    %1388 = vmatpush2.bf16.msra.mxu0 %v1032
    %1389 = vmatprep.subr.bf16.mxu0 %v1029
    %1390 = vmatpush2.bf16.msra.mxu0 %v1028
    %1391 = vmatprep.subr.bf16.mxu0 %v1025
    %1392 = vmatpush2.bf16.msra.mxu0 %v1024
    %1393 = vmatprep.subr.bf16.mxu0 %v1021
    %1394 = vmatpush2.bf16.msra.mxu0 %v1020
    %1395 = vmatprep.mubr.bf16.mxu0 %v114
    %1396 = vmatmul.mubr.bf16.gmra.mxu0 %v113
    %v1397 = vpop.f32.mrf.mxu0
    %v1398 = vadd.f32 %v1355, %v1397
    %v1399 = vpop.f32.mrf.mxu0
    %v1400 = vadd.f32 %v1357, %v1399
    %v1401 = vpop.f32.mrf.mxu0
    %v1402 = vadd.f32 %v1359, %v1401
    %v1403 = vpop.f32.mrf.mxu0
    %v1404 = vadd.f32 %v1361, %v1403
    %1405 = vdwg.mxu0
    %1406 = vmatprep.subr.bf16.mxu0 %v1081
    %1407 = vmatpush1.bf16.msra.mxu0 %v1080
    %1408 = vmatprep.subr.bf16.mxu0 %v1077
    %1409 = vmatpush1.bf16.msra.mxu0 %v1076
    %1410 = vmatprep.subr.bf16.mxu0 %v1073
    %1411 = vmatpush1.bf16.msra.mxu0 %v1072
    %1412 = vmatprep.subr.bf16.mxu0 %v1069
    %1413 = vmatpush1.bf16.msra.mxu0 %v1068
    %1414 = vmatprep.subr.bf16.mxu0 %v1065
    %1415 = vmatpush1.bf16.msra.mxu0 %v1064
    %1416 = vmatprep.subr.bf16.mxu0 %v1061
    %1417 = vmatpush1.bf16.msra.mxu0 %v1060
    %1418 = vmatprep.subr.bf16.mxu0 %v1057
    %1419 = vmatpush1.bf16.msra.mxu0 %v1056
    %1420 = vmatprep.subr.bf16.mxu0 %v1053
    %1421 = vmatpush1.bf16.msra.mxu0 %v1052
    %1422 = vmatprep.subr.bf16.mxu0 %v1113
    %1423 = vmatpush2.bf16.msra.mxu0 %v1112
    %1424 = vmatprep.subr.bf16.mxu0 %v1109
    %1425 = vmatpush2.bf16.msra.mxu0 %v1108
    %1426 = vmatprep.subr.bf16.mxu0 %v1105
    %1427 = vmatpush2.bf16.msra.mxu0 %v1104
    %1428 = vmatprep.subr.bf16.mxu0 %v1101
    %1429 = vmatpush2.bf16.msra.mxu0 %v1100
    %1430 = vmatprep.subr.bf16.mxu0 %v1097
    %1431 = vmatpush2.bf16.msra.mxu0 %v1096
    %1432 = vmatprep.subr.bf16.mxu0 %v1093
    %1433 = vmatpush2.bf16.msra.mxu0 %v1092
    %1434 = vmatprep.subr.bf16.mxu0 %v1089
    %1435 = vmatpush2.bf16.msra.mxu0 %v1088
    %1436 = vmatprep.subr.bf16.mxu0 %v1085
    %1437 = vmatpush2.bf16.msra.mxu0 %v1084
    %1438 = vmatprep.mubr.bf16.mxu0 %v116
    %1439 = vmatmul.mubr.bf16.gmra.mxu0 %v115
    %v1440 = vpop.f32.mrf.mxu0
    %v1441 = vadd.f32 %v1398, %v1440
    %v1442 = vpop.f32.mrf.mxu0
    %v1443 = vadd.f32 %v1400, %v1442
    %v1444 = vpop.f32.mrf.mxu0
    %v1445 = vadd.f32 %v1402, %v1444
    %v1446 = vpop.f32.mrf.mxu0
    %v1447 = vadd.f32 %v1404, %v1446
    %1448 = vdwg.mxu0
    %1449 = vmatprep.subr.bf16.mxu0 0
    %1450 = vmatpush1.bf16.msra.mxu0 0
    %1451 = vmatprep.subr.bf16.mxu0 0
    %1452 = vmatpush1.bf16.msra.mxu0 0
    %1453 = vmatprep.subr.bf16.mxu0 0
    %1454 = vmatpush1.bf16.msra.mxu0 0
    %1455 = vmatprep.subr.bf16.mxu0 0
    %1456 = vmatpush1.bf16.msra.mxu0 0
    %1457 = vmatprep.subr.bf16.mxu0 0
    %1458 = vmatpush1.bf16.msra.mxu0 0
    %1459 = vmatprep.subr.bf16.mxu0 0
    %1460 = vmatpush1.bf16.msra.mxu0 0
    %1461 = vmatprep.subr.bf16.mxu0 0
    %1462 = vmatpush1.bf16.msra.mxu0 0
    %1463 = vmatprep.subr.bf16.mxu0 %v1117
    %1464 = vmatpush1.bf16.msra.mxu0 %v1116
    %1465 = vmatprep.subr.bf16.mxu0 0
    %1466 = vmatpush2.bf16.msra.mxu0 0
    %1467 = vmatprep.subr.bf16.mxu0 0
    %1468 = vmatpush2.bf16.msra.mxu0 0
    %1469 = vmatprep.subr.bf16.mxu0 0
    %1470 = vmatpush2.bf16.msra.mxu0 0
    %1471 = vmatprep.subr.bf16.mxu0 0
    %1472 = vmatpush2.bf16.msra.mxu0 0
    %1473 = vmatprep.subr.bf16.mxu0 0
    %1474 = vmatpush2.bf16.msra.mxu0 0
    %1475 = vmatprep.subr.bf16.mxu0 0
    %1476 = vmatpush2.bf16.msra.mxu0 0
    %1477 = vmatprep.subr.bf16.mxu0 0
    %1478 = vmatpush2.bf16.msra.mxu0 0
    %1479 = vmatprep.subr.bf16.mxu0 0
    %1480 = vmatpush2.bf16.msra.mxu0 0
    %1481 = vmatprep.mubr.bf16.mxu0 0
    %1482 = vmatmul.mubr.bf16.gmra.mxu0 %v1318
    %v1483 = vpop.f32.mrf.mxu0
    %v1484 = vadd.f32 %v1441, %v1483
    %v1485 = vpop.f32.mrf.mxu0
    %v1486 = vadd.f32 %v1443, %v1485
    %v1487 = vpop.f32.mrf.mxu0
    %v1488 = vadd.f32 %v1445, %v1487
    %v1489 = vpop.f32.mrf.mxu0
    %v1490 = vadd.f32 %v1447, %v1489
    %1491 = vdwg.mxu0
    %1492 = vmatprep.subr.bf16.mxu0 %v955
    %1493 = vmatpush1.bf16.msra.mxu0 %v954
    %1494 = vmatprep.subr.bf16.mxu0 %v951
    %1495 = vmatpush1.bf16.msra.mxu0 %v950
    %1496 = vmatprep.subr.bf16.mxu0 %v947
    %1497 = vmatpush1.bf16.msra.mxu0 %v946
    %1498 = vmatprep.subr.bf16.mxu0 %v943
    %1499 = vmatpush1.bf16.msra.mxu0 %v942
    %1500 = vmatprep.subr.bf16.mxu0 %v939
    %1501 = vmatpush1.bf16.msra.mxu0 %v938
    %1502 = vmatprep.subr.bf16.mxu0 %v935
    %1503 = vmatpush1.bf16.msra.mxu0 %v934
    %1504 = vmatprep.subr.bf16.mxu0 %v931
    %1505 = vmatpush1.bf16.msra.mxu0 %v930
    %1506 = vmatprep.subr.bf16.mxu0 %v927
    %1507 = vmatpush1.bf16.msra.mxu0 %v926
    %1508 = vmatprep.subr.bf16.mxu0 %v987
    %1509 = vmatpush2.bf16.msra.mxu0 %v986
    %1510 = vmatprep.subr.bf16.mxu0 %v983
    %1511 = vmatpush2.bf16.msra.mxu0 %v982
    %1512 = vmatprep.subr.bf16.mxu0 %v979
    %1513 = vmatpush2.bf16.msra.mxu0 %v978
    %1514 = vmatprep.subr.bf16.mxu0 %v975
    %1515 = vmatpush2.bf16.msra.mxu0 %v974
    %1516 = vmatprep.subr.bf16.mxu0 %v971
    %1517 = vmatpush2.bf16.msra.mxu0 %v970
    %1518 = vmatprep.subr.bf16.mxu0 %v967
    %1519 = vmatpush2.bf16.msra.mxu0 %v966
    %1520 = vmatprep.subr.bf16.mxu0 %v963
    %1521 = vmatpush2.bf16.msra.mxu0 %v962
    %1522 = vmatprep.subr.bf16.mxu0 %v959
    %1523 = vmatpush2.bf16.msra.mxu0 %v958
    %1524 = vmatprep.mubr.bf16.mxu0 %v112
    %1525 = vmatmul.mubr.bf16.gmra.mxu0 %v111
    %v1526 = vpop.f32.mrf.mxu0
    %v1527 = vadd.f32 %v327, %v1526
    %v1528 = vpop.f32.mrf.mxu0
    %v1529 = vadd.f32 %v331, %v1528
    %v1530 = vpop.f32.mrf.mxu0
    %v1531 = vadd.f32 %v327, %v1530
    %v1532 = vpop.f32.mrf.mxu0
    %v1533 = vadd.f32 %v331, %v1532
    %1534 = vdwg.mxu0
    %1535 = vmatprep.subr.bf16.mxu0 %v1019
    %1536 = vmatpush1.bf16.msra.mxu0 %v1018
    %1537 = vmatprep.subr.bf16.mxu0 %v1015
    %1538 = vmatpush1.bf16.msra.mxu0 %v1014
    %1539 = vmatprep.subr.bf16.mxu0 %v1011
    %1540 = vmatpush1.bf16.msra.mxu0 %v1010
    %1541 = vmatprep.subr.bf16.mxu0 %v1007
    %1542 = vmatpush1.bf16.msra.mxu0 %v1006
    %1543 = vmatprep.subr.bf16.mxu0 %v1003
    %1544 = vmatpush1.bf16.msra.mxu0 %v1002
    %1545 = vmatprep.subr.bf16.mxu0 %v999
    %1546 = vmatpush1.bf16.msra.mxu0 %v998
    %1547 = vmatprep.subr.bf16.mxu0 %v995
    %1548 = vmatpush1.bf16.msra.mxu0 %v994
    %1549 = vmatprep.subr.bf16.mxu0 %v991
    %1550 = vmatpush1.bf16.msra.mxu0 %v990
    %1551 = vmatprep.subr.bf16.mxu0 %v1051
    %1552 = vmatpush2.bf16.msra.mxu0 %v1050
    %1553 = vmatprep.subr.bf16.mxu0 %v1047
    %1554 = vmatpush2.bf16.msra.mxu0 %v1046
    %1555 = vmatprep.subr.bf16.mxu0 %v1043
    %1556 = vmatpush2.bf16.msra.mxu0 %v1042
    %1557 = vmatprep.subr.bf16.mxu0 %v1039
    %1558 = vmatpush2.bf16.msra.mxu0 %v1038
    %1559 = vmatprep.subr.bf16.mxu0 %v1035
    %1560 = vmatpush2.bf16.msra.mxu0 %v1034
    %1561 = vmatprep.subr.bf16.mxu0 %v1031
    %1562 = vmatpush2.bf16.msra.mxu0 %v1030
    %1563 = vmatprep.subr.bf16.mxu0 %v1027
    %1564 = vmatpush2.bf16.msra.mxu0 %v1026
    %1565 = vmatprep.subr.bf16.mxu0 %v1023
    %1566 = vmatpush2.bf16.msra.mxu0 %v1022
    %1567 = vmatprep.mubr.bf16.mxu0 %v114
    %1568 = vmatmul.mubr.bf16.gmra.mxu0 %v113
    %v1569 = vpop.f32.mrf.mxu0
    %v1570 = vadd.f32 %v1527, %v1569
    %v1571 = vpop.f32.mrf.mxu0
    %v1572 = vadd.f32 %v1529, %v1571
    %v1573 = vpop.f32.mrf.mxu0
    %v1574 = vadd.f32 %v1531, %v1573
    %v1575 = vpop.f32.mrf.mxu0
    %v1576 = vadd.f32 %v1533, %v1575
    %1577 = vdwg.mxu0
    %1578 = vmatprep.subr.bf16.mxu0 %v1083
    %1579 = vmatpush1.bf16.msra.mxu0 %v1082
    %1580 = vmatprep.subr.bf16.mxu0 %v1079
    %1581 = vmatpush1.bf16.msra.mxu0 %v1078
    %1582 = vmatprep.subr.bf16.mxu0 %v1075
    %1583 = vmatpush1.bf16.msra.mxu0 %v1074
    %1584 = vmatprep.subr.bf16.mxu0 %v1071
    %1585 = vmatpush1.bf16.msra.mxu0 %v1070
    %1586 = vmatprep.subr.bf16.mxu0 %v1067
    %1587 = vmatpush1.bf16.msra.mxu0 %v1066
    %1588 = vmatprep.subr.bf16.mxu0 %v1063
    %1589 = vmatpush1.bf16.msra.mxu0 %v1062
    %1590 = vmatprep.subr.bf16.mxu0 %v1059
    %1591 = vmatpush1.bf16.msra.mxu0 %v1058
    %1592 = vmatprep.subr.bf16.mxu0 %v1055
    %1593 = vmatpush1.bf16.msra.mxu0 %v1054
    %1594 = vmatprep.subr.bf16.mxu0 %v1115
    %1595 = vmatpush2.bf16.msra.mxu0 %v1114
    %1596 = vmatprep.subr.bf16.mxu0 %v1111
    %1597 = vmatpush2.bf16.msra.mxu0 %v1110
    %1598 = vmatprep.subr.bf16.mxu0 %v1107
    %1599 = vmatpush2.bf16.msra.mxu0 %v1106
    %1600 = vmatprep.subr.bf16.mxu0 %v1103
    %1601 = vmatpush2.bf16.msra.mxu0 %v1102
    %1602 = vmatprep.subr.bf16.mxu0 %v1099
    %1603 = vmatpush2.bf16.msra.mxu0 %v1098
    %1604 = vmatprep.subr.bf16.mxu0 %v1095
    %1605 = vmatpush2.bf16.msra.mxu0 %v1094
    %1606 = vmatprep.subr.bf16.mxu0 %v1091
    %1607 = vmatpush2.bf16.msra.mxu0 %v1090
    %1608 = vmatprep.subr.bf16.mxu0 %v1087
    %1609 = vmatpush2.bf16.msra.mxu0 %v1086
    %1610 = vmatprep.mubr.bf16.mxu0 %v116
    %1611 = vmatmul.mubr.bf16.gmra.mxu0 %v115
    %v1612 = vpop.f32.mrf.mxu0
    %v1613 = vadd.f32 %v1570, %v1612
    %v1614 = vpop.f32.mrf.mxu0
    %v1615 = vadd.f32 %v1572, %v1614
    %v1616 = vpop.f32.mrf.mxu0
    %v1617 = vadd.f32 %v1574, %v1616
    %v1618 = vpop.f32.mrf.mxu0
    %v1619 = vadd.f32 %v1576, %v1618
    %1620 = vdwg.mxu0
    %1621 = vmatprep.subr.bf16.mxu0 0
    %1622 = vmatpush1.bf16.msra.mxu0 0
    %1623 = vmatprep.subr.bf16.mxu0 0
    %1624 = vmatpush1.bf16.msra.mxu0 0
    %1625 = vmatprep.subr.bf16.mxu0 0
    %1626 = vmatpush1.bf16.msra.mxu0 0
    %1627 = vmatprep.subr.bf16.mxu0 0
    %1628 = vmatpush1.bf16.msra.mxu0 0
    %1629 = vmatprep.subr.bf16.mxu0 0
    %1630 = vmatpush1.bf16.msra.mxu0 0
    %1631 = vmatprep.subr.bf16.mxu0 0
    %1632 = vmatpush1.bf16.msra.mxu0 0
    %1633 = vmatprep.subr.bf16.mxu0 0
    %1634 = vmatpush1.bf16.msra.mxu0 0
    %1635 = vmatprep.subr.bf16.mxu0 %v1119
    %1636 = vmatpush1.bf16.msra.mxu0 %v1118
    %1637 = vmatprep.subr.bf16.mxu0 0
    %1638 = vmatpush2.bf16.msra.mxu0 0
    %1639 = vmatprep.subr.bf16.mxu0 0
    %1640 = vmatpush2.bf16.msra.mxu0 0
    %1641 = vmatprep.subr.bf16.mxu0 0
    %1642 = vmatpush2.bf16.msra.mxu0 0
    %1643 = vmatprep.subr.bf16.mxu0 0
    %1644 = vmatpush2.bf16.msra.mxu0 0
    %1645 = vmatprep.subr.bf16.mxu0 0
    %1646 = vmatpush2.bf16.msra.mxu0 0
    %1647 = vmatprep.subr.bf16.mxu0 0
    %1648 = vmatpush2.bf16.msra.mxu0 0
    %1649 = vmatprep.subr.bf16.mxu0 0
    %1650 = vmatpush2.bf16.msra.mxu0 0
    %1651 = vmatprep.subr.bf16.mxu0 0
    %1652 = vmatpush2.bf16.msra.mxu0 0
    %1653 = vmatprep.mubr.bf16.mxu0 0
    %1654 = vmatmul.mubr.bf16.gmra.mxu0 %v1318
    %v1655 = vpop.f32.mrf.mxu0
    %v1656 = vadd.f32 %v1613, %v1655
    %v1657 = vpop.f32.mrf.mxu0
    %v1658 = vadd.f32 %v1615, %v1657
    %v1659 = vpop.f32.mrf.mxu0
    %v1660 = vadd.f32 %v1617, %v1659
    %v1661 = vpop.f32.mrf.mxu0
    %v1662 = vadd.f32 %v1619, %v1661
    %1663 = vdwg.mxu0
    %v1664 = vmax.f32 %v1484, 0.0
    %v1665 = vmax.f32 %v1486, 0.0
    %v1666 = vmax.f32 %v1656, 0.0
    %v1667 = vmax.f32 %v1658, 0.0
    %v1668 = vmax.f32 %v1488, 0.0
    %v1669 = vmax.f32 %v1490, 0.0
    %v1670 = vmax.f32 %v1660, 0.0
    %v1671 = vmax.f32 %v1662, 0.0
    %v1672 = vpack.c.bf16 %v1668, %v1664
    %v1673 = vpack.c.bf16 %v1669, %v1665
    %v1674 = vpack.c.bf16 %v1670, %v1666
    %v1675 = vpack.c.bf16 %v1671, %v1667
    %v1676 = vld [vmem:[#allocation8] sm:$0xff]
    %v1677 = vld [vmem:[#allocation8 + $0x8] sm:$0xff]
    %v1678 = vld [vmem:[#allocation8 + $0x10] sm:$0xff]
    %v1679 = vld [vmem:[#allocation8 + $0x18] sm:$0xff]
    %v1680 = vld [vmem:[#allocation8 + $0x20] sm:$0xff]
    %v1681 = vld [vmem:[#allocation8 + $0x28] sm:$0xff]
    %v1682 = vld [vmem:[#allocation8 + $0x30] sm:$0xff]
    %v1683 = vld [vmem:[#allocation8 + $0x38] sm:$0xff]
    %v1684 = vld [vmem:[#allocation8 + $0x40] sm:$0xff]
    %v1685 = vld [vmem:[#allocation8 + $0x48] sm:$0xff]
    %v1686 = vld [vmem:[#allocation8 + $0x50] sm:$0xff]
    %v1687 = vld [vmem:[#allocation8 + $0x58] sm:$0xff]
    %v1688 = vld [vmem:[#allocation8 + $0x60] sm:$0xff]
    %v1689 = vld [vmem:[#allocation8 + $0x68] sm:$0xff]
    %v1690 = vld [vmem:[#allocation8 + $0x70] sm:$0xff]
    %v1691 = vld [vmem:[#allocation8 + $0x78] sm:$0xff]
    %v1692 = vld [vmem:[#allocation8 + $0x80] sm:$0xff]
    %v1693 = vld [vmem:[#allocation8 + $0x88] sm:$0xff]
    %v1694 = vld [vmem:[#allocation8 + $0x90] sm:$0xff]
    %v1695 = vld [vmem:[#allocation8 + $0x98] sm:$0xff]
    %v1696 = vld [vmem:[#allocation8 + $0xa0] sm:$0xff]
    %v1697 = vld [vmem:[#allocation8 + $0xa8] sm:$0xff]
    %v1698 = vld [vmem:[#allocation8 + $0xb0] sm:$0xff]
    %v1699 = vld [vmem:[#allocation8 + $0xb8] sm:$0xff]
    %v1700 = vld [vmem:[#allocation8 + $0xc0] sm:$0xff]
    %v1701 = vld [vmem:[#allocation8 + $0xc8] sm:$0xff]
    %v1702 = vld [vmem:[#allocation8 + $0xd0] sm:$0xff]
    %v1703 = vld [vmem:[#allocation8 + $0xd8] sm:$0xff]
    %v1704 = vld [vmem:[#allocation8 + $0xe0] sm:$0xff]
    %v1705 = vld [vmem:[#allocation8 + $0xe8] sm:$0xff]
    %v1706 = vld [vmem:[#allocation8 + $0xf0] sm:$0xff]
    %v1707 = vld [vmem:[#allocation8 + $0xf8] sm:$0xff]
    %v1708 = vld [vmem:[#allocation8 + $0x100] sm:$0xff]
    %v1709 = vld [vmem:[#allocation8 + $0x108] sm:$0xff]
    %v1710 = vld [vmem:[#allocation8 + $0x110] sm:$0xff]
    %v1711 = vld [vmem:[#allocation8 + $0x118] sm:$0xff]
    %v1712 = vld [vmem:[#allocation8 + $0x120] sm:$0xff]
    %v1713 = vld [vmem:[#allocation8 + $0x128] sm:$0xff]
    %v1714 = vld [vmem:[#allocation8 + $0x130] sm:$0xff]
    %v1715 = vld [vmem:[#allocation8 + $0x138] sm:$0xff]
    %v1716 = vld [vmem:[#allocation8 + $0x140] sm:$0xff]
    %v1717 = vld [vmem:[#allocation8 + $0x148] sm:$0xff]
    %v1718 = vld [vmem:[#allocation8 + $0x150] sm:$0xff]
    %v1719 = vld [vmem:[#allocation8 + $0x158] sm:$0xff]
    %v1720 = vld [vmem:[#allocation8 + $0x160] sm:$0xff]
    %v1721 = vld [vmem:[#allocation8 + $0x168] sm:$0xff]
    %v1722 = vld [vmem:[#allocation8 + $0x170] sm:$0xff]
    %v1723 = vld [vmem:[#allocation8 + $0x178] sm:$0xff]
    %v1724 = vld [vmem:[#allocation8 + $0x180] sm:$0xff]
    %v1725 = vld [vmem:[#allocation8 + $0x188] sm:$0xff]
    %v1726 = vld [vmem:[#allocation8 + $0x190] sm:$0xff]
    %v1727 = vld [vmem:[#allocation8 + $0x198] sm:$0xff]
    %v1728 = vld [vmem:[#allocation8 + $0x1a0] sm:$0xff]
    %v1729 = vld [vmem:[#allocation8 + $0x1a8] sm:$0xff]
    %v1730 = vld [vmem:[#allocation8 + $0x1b0] sm:$0xff]
    %v1731 = vld [vmem:[#allocation8 + $0x1b8] sm:$0xff]
    %v1732 = vld [vmem:[#allocation8 + $0x1c0] sm:$0xff]
    %v1733 = vld [vmem:[#allocation8 + $0x1c8] sm:$0xff]
    %v1734 = vld [vmem:[#allocation8 + $0x1d0] sm:$0xff]
    %v1735 = vld [vmem:[#allocation8 + $0x1d8] sm:$0xff]
    %v1736 = vld [vmem:[#allocation8 + $0x1e0] sm:$0xff]
    %v1737 = vld [vmem:[#allocation8 + $0x1e8] sm:$0xff]
    %v1738 = vld [vmem:[#allocation8 + $0x1f0] sm:$0xff]
    %v1739 = vld [vmem:[#allocation8 + $0x1f8] sm:$0xff]
    %v1740 = vld [vmem:[#allocation8 + $0x200] sm:$0xff]
    %v1741 = vld [vmem:[#allocation8 + $0x208] sm:$0xff]
    %v1742 = vld [vmem:[#allocation8 + $0x210] sm:$0xff]
    %v1743 = vld [vmem:[#allocation8 + $0x218] sm:$0xff]
    %v1744 = vld [vmem:[#allocation8 + $0x220] sm:$0xff]
    %v1745 = vld [vmem:[#allocation8 + $0x228] sm:$0xff]
    %v1746 = vld [vmem:[#allocation8 + $0x230] sm:$0xff]
    %v1747 = vld [vmem:[#allocation8 + $0x238] sm:$0xff]
    %v1748 = vld [vmem:[#allocation8 + $0x240] sm:$0xff]
    %v1749 = vld [vmem:[#allocation8 + $0x248] sm:$0xff]
    %v1750 = vld [vmem:[#allocation8 + $0x250] sm:$0xff]
    %v1751 = vld [vmem:[#allocation8 + $0x258] sm:$0xff]
    %v1752 = vld [vmem:[#allocation8 + $0x260] sm:$0xff]
    %v1753 = vld [vmem:[#allocation8 + $0x268] sm:$0xff]
    %v1754 = vld [vmem:[#allocation8 + $0x270] sm:$0xff]
    %v1755 = vld [vmem:[#allocation8 + $0x278] sm:$0xff]
    %v1756 = vld [vmem:[#allocation8 + $0x280] sm:$0xff]
    %v1757 = vld [vmem:[#allocation8 + $0x288] sm:$0xff]
    %v1758 = vld [vmem:[#allocation8 + $0x290] sm:$0xff]
    %v1759 = vld [vmem:[#allocation8 + $0x298] sm:$0xff]
    %v1760 = vld [vmem:[#allocation8 + $0x2a0] sm:$0xff]
    %v1761 = vld [vmem:[#allocation8 + $0x2a8] sm:$0xff]
    %v1762 = vld [vmem:[#allocation8 + $0x2b0] sm:$0xff]
    %v1763 = vld [vmem:[#allocation8 + $0x2b8] sm:$0xff]
    %v1764 = vld [vmem:[#allocation8 + $0x2c0] sm:$0xff]
    %v1765 = vld [vmem:[#allocation8 + $0x2c8] sm:$0xff]
    %v1766 = vld [vmem:[#allocation8 + $0x2d0] sm:$0xff]
    %v1767 = vld [vmem:[#allocation8 + $0x2d8] sm:$0xff]
    %v1768 = vld [vmem:[#allocation8 + $0x2e0] sm:$0xff]
    %v1769 = vld [vmem:[#allocation8 + $0x2e8] sm:$0xff]
    %v1770 = vld [vmem:[#allocation8 + $0x2f0] sm:$0xff]
    %v1771 = vld [vmem:[#allocation8 + $0x2f8] sm:$0xff]
    %v1772 = vld [vmem:[#allocation8 + $0x300] sm:$0xff]
    %v1773 = vld [vmem:[#allocation8 + $0x308] sm:$0xff]
    %v1774 = vld [vmem:[#allocation8 + $0x310] sm:$0xff]
    %v1775 = vld [vmem:[#allocation8 + $0x318] sm:$0xff]
    %v1776 = vld [vmem:[#allocation8 + $0x320] sm:$0xff]
    %v1777 = vld [vmem:[#allocation8 + $0x328] sm:$0xff]
    %v1778 = vld [vmem:[#allocation8 + $0x330] sm:$0xff]
    %v1779 = vld [vmem:[#allocation8 + $0x338] sm:$0xff]
    %v1780 = vld [vmem:[#allocation8 + $0x340] sm:$0xff]
    %v1781 = vld [vmem:[#allocation8 + $0x348] sm:$0xff]
    %v1782 = vld [vmem:[#allocation8 + $0x350] sm:$0xff]
    %v1783 = vld [vmem:[#allocation8 + $0x358] sm:$0xff]
    %v1784 = vld [vmem:[#allocation8 + $0x360] sm:$0xff]
    %v1785 = vld [vmem:[#allocation8 + $0x368] sm:$0xff]
    %v1786 = vld [vmem:[#allocation8 + $0x370] sm:$0xff]
    %v1787 = vld [vmem:[#allocation8 + $0x378] sm:$0xff]
    %v1788 = vld [vmem:[#allocation8 + $0x380] sm:$0xff]
    %v1789 = vld [vmem:[#allocation8 + $0x388] sm:$0xff]
    %v1790 = vld [vmem:[#allocation8 + $0x390] sm:$0xff]
    %v1791 = vld [vmem:[#allocation8 + $0x398] sm:$0xff]
    %v1792 = vld [vmem:[#allocation8 + $0x3a0] sm:$0xff]
    %v1793 = vld [vmem:[#allocation8 + $0x3a8] sm:$0xff]
    %v1794 = vld [vmem:[#allocation8 + $0x3b0] sm:$0xff]
    %v1795 = vld [vmem:[#allocation8 + $0x3b8] sm:$0xff]
    %v1796 = vld [vmem:[#allocation8 + $0x3c0] sm:$0xff]
    %v1797 = vld [vmem:[#allocation8 + $0x3c8] sm:$0xff]
    %v1798 = vld [vmem:[#allocation8 + $0x3d0] sm:$0xff]
    %v1799 = vld [vmem:[#allocation8 + $0x3d8] sm:$0xff]
    %v1800 = vld [vmem:[#allocation8 + $0x3e0] sm:$0xff]
    %v1801 = vld [vmem:[#allocation8 + $0x3e8] sm:$0xff]
    %v1802 = vld [vmem:[#allocation8 + $0x3f0] sm:$0xff]
    %v1803 = vld [vmem:[#allocation8 + $0x3f8] sm:$0xff]
    %v1804 = vld [vmem:[%s4] sm:$0xf]
    %v1806 = vlaneseq
    %v1807 = vshrl.u32 %v1806, 7
    %v1808 = vsub.s32 0, %v1807
    %v1809 = vrot.slane %v1804, %v1808
    %v1810 = vlaneseq
    %v1811 = vshrl.u32 %v1810, 7
    %v1812 = vsub.s32 1, %v1811
    %v1813 = vrot.slane %v1804, %v1812
    %v1814 = vlaneseq
    %v1815 = vshrl.u32 %v1814, 7
    %v1816 = vsub.s32 2, %v1815
    %v1817 = vrot.slane %v1804, %v1816
    %v1818 = vlaneseq
    %v1819 = vshrl.u32 %v1818, 7
    %v1820 = vsub.s32 3, %v1819
    %v1821 = vrot.slane %v1804, %v1820
    %v1954 = vunpack.c.l.b16 %v1676
    %v1955 = vunpack.c.h.b16 %v1676
    %v1956 = vunpack.c.l.b16 %v1677
    %v1957 = vunpack.c.h.b16 %v1677
    %v1958 = vunpack.c.l.b16 %v1678
    %v1959 = vunpack.c.h.b16 %v1678
    %v1960 = vunpack.c.l.b16 %v1679
    %v1961 = vunpack.c.h.b16 %v1679
    %v1962 = vunpack.c.l.b16 %v1680
    %v1963 = vunpack.c.h.b16 %v1680
    %v1964 = vunpack.c.l.b16 %v1681
    %v1965 = vunpack.c.h.b16 %v1681
    %v1966 = vunpack.c.l.b16 %v1682
    %v1967 = vunpack.c.h.b16 %v1682
    %v1968 = vunpack.c.l.b16 %v1683
    %v1969 = vunpack.c.h.b16 %v1683
    %v1970 = vunpack.c.l.b16 %v1684
    %v1971 = vunpack.c.h.b16 %v1684
    %v1972 = vunpack.c.l.b16 %v1685
    %v1973 = vunpack.c.h.b16 %v1685
    %v1974 = vunpack.c.l.b16 %v1686
    %v1975 = vunpack.c.h.b16 %v1686
    %v1976 = vunpack.c.l.b16 %v1687
    %v1977 = vunpack.c.h.b16 %v1687
    %v1978 = vunpack.c.l.b16 %v1688
    %v1979 = vunpack.c.h.b16 %v1688
    %v1980 = vunpack.c.l.b16 %v1689
    %v1981 = vunpack.c.h.b16 %v1689
    %v1982 = vunpack.c.l.b16 %v1690
    %v1983 = vunpack.c.h.b16 %v1690
    %v1984 = vunpack.c.l.b16 %v1691
    %v1985 = vunpack.c.h.b16 %v1691
    %v1986 = vunpack.c.l.b16 %v1692
    %v1987 = vunpack.c.h.b16 %v1692
    %v1988 = vunpack.c.l.b16 %v1693
    %v1989 = vunpack.c.h.b16 %v1693
    %v1990 = vunpack.c.l.b16 %v1694
    %v1991 = vunpack.c.h.b16 %v1694
    %v1992 = vunpack.c.l.b16 %v1695
    %v1993 = vunpack.c.h.b16 %v1695
    %v1994 = vunpack.c.l.b16 %v1696
    %v1995 = vunpack.c.h.b16 %v1696
    %v1996 = vunpack.c.l.b16 %v1697
    %v1997 = vunpack.c.h.b16 %v1697
    %v1998 = vunpack.c.l.b16 %v1698
    %v1999 = vunpack.c.h.b16 %v1698
    %v2000 = vunpack.c.l.b16 %v1699
    %v2001 = vunpack.c.h.b16 %v1699
    %v2002 = vunpack.c.l.b16 %v1700
    %v2003 = vunpack.c.h.b16 %v1700
    %v2004 = vunpack.c.l.b16 %v1701
    %v2005 = vunpack.c.h.b16 %v1701
    %v2006 = vunpack.c.l.b16 %v1702
    %v2007 = vunpack.c.h.b16 %v1702
    %v2008 = vunpack.c.l.b16 %v1703
    %v2009 = vunpack.c.h.b16 %v1703
    %v2010 = vunpack.c.l.b16 %v1704
    %v2011 = vunpack.c.h.b16 %v1704
    %v2012 = vunpack.c.l.b16 %v1705
    %v2013 = vunpack.c.h.b16 %v1705
    %v2014 = vunpack.c.l.b16 %v1706
    %v2015 = vunpack.c.h.b16 %v1706
    %v2016 = vunpack.c.l.b16 %v1707
    %v2017 = vunpack.c.h.b16 %v1707
    %v2018 = vunpack.c.l.b16 %v1708
    %v2019 = vunpack.c.h.b16 %v1708
    %v2020 = vunpack.c.l.b16 %v1709
    %v2021 = vunpack.c.h.b16 %v1709
    %v2022 = vunpack.c.l.b16 %v1710
    %v2023 = vunpack.c.h.b16 %v1710
    %v2024 = vunpack.c.l.b16 %v1711
    %v2025 = vunpack.c.h.b16 %v1711
    %v2026 = vunpack.c.l.b16 %v1712
    %v2027 = vunpack.c.h.b16 %v1712
    %v2028 = vunpack.c.l.b16 %v1713
    %v2029 = vunpack.c.h.b16 %v1713
    %v2030 = vunpack.c.l.b16 %v1714
    %v2031 = vunpack.c.h.b16 %v1714
    %v2032 = vunpack.c.l.b16 %v1715
    %v2033 = vunpack.c.h.b16 %v1715
    %v2034 = vunpack.c.l.b16 %v1716
    %v2035 = vunpack.c.h.b16 %v1716
    %v2036 = vunpack.c.l.b16 %v1717
    %v2037 = vunpack.c.h.b16 %v1717
    %v2038 = vunpack.c.l.b16 %v1718
    %v2039 = vunpack.c.h.b16 %v1718
    %v2040 = vunpack.c.l.b16 %v1719
    %v2041 = vunpack.c.h.b16 %v1719
    %v2042 = vunpack.c.l.b16 %v1720
    %v2043 = vunpack.c.h.b16 %v1720
    %v2044 = vunpack.c.l.b16 %v1721
    %v2045 = vunpack.c.h.b16 %v1721
    %v2046 = vunpack.c.l.b16 %v1722
    %v2047 = vunpack.c.h.b16 %v1722
    %v2048 = vunpack.c.l.b16 %v1723
    %v2049 = vunpack.c.h.b16 %v1723
    %v2050 = vunpack.c.l.b16 %v1724
    %v2051 = vunpack.c.h.b16 %v1724
    %v2052 = vunpack.c.l.b16 %v1725
    %v2053 = vunpack.c.h.b16 %v1725
    %v2054 = vunpack.c.l.b16 %v1726
    %v2055 = vunpack.c.h.b16 %v1726
    %v2056 = vunpack.c.l.b16 %v1727
    %v2057 = vunpack.c.h.b16 %v1727
    %v2058 = vunpack.c.l.b16 %v1728
    %v2059 = vunpack.c.h.b16 %v1728
    %v2060 = vunpack.c.l.b16 %v1729
    %v2061 = vunpack.c.h.b16 %v1729
    %v2062 = vunpack.c.l.b16 %v1730
    %v2063 = vunpack.c.h.b16 %v1730
    %v2064 = vunpack.c.l.b16 %v1731
    %v2065 = vunpack.c.h.b16 %v1731
    %v2066 = vunpack.c.l.b16 %v1732
    %v2067 = vunpack.c.h.b16 %v1732
    %v2068 = vunpack.c.l.b16 %v1733
    %v2069 = vunpack.c.h.b16 %v1733
    %v2070 = vunpack.c.l.b16 %v1734
    %v2071 = vunpack.c.h.b16 %v1734
    %v2072 = vunpack.c.l.b16 %v1735
    %v2073 = vunpack.c.h.b16 %v1735
    %v2074 = vunpack.c.l.b16 %v1736
    %v2075 = vunpack.c.h.b16 %v1736
    %v2076 = vunpack.c.l.b16 %v1737
    %v2077 = vunpack.c.h.b16 %v1737
    %v2078 = vunpack.c.l.b16 %v1738
    %v2079 = vunpack.c.h.b16 %v1738
    %v2080 = vunpack.c.l.b16 %v1739
    %v2081 = vunpack.c.h.b16 %v1739
    %v2082 = vunpack.c.l.b16 %v1740
    %v2083 = vunpack.c.h.b16 %v1740
    %v2084 = vunpack.c.l.b16 %v1741
    %v2085 = vunpack.c.h.b16 %v1741
    %v2086 = vunpack.c.l.b16 %v1742
    %v2087 = vunpack.c.h.b16 %v1742
    %v2088 = vunpack.c.l.b16 %v1743
    %v2089 = vunpack.c.h.b16 %v1743
    %v2090 = vunpack.c.l.b16 %v1744
    %v2091 = vunpack.c.h.b16 %v1744
    %v2092 = vunpack.c.l.b16 %v1745
    %v2093 = vunpack.c.h.b16 %v1745
    %v2094 = vunpack.c.l.b16 %v1746
    %v2095 = vunpack.c.h.b16 %v1746
    %v2096 = vunpack.c.l.b16 %v1747
    %v2097 = vunpack.c.h.b16 %v1747
    %v2098 = vunpack.c.l.b16 %v1748
    %v2099 = vunpack.c.h.b16 %v1748
    %v2100 = vunpack.c.l.b16 %v1749
    %v2101 = vunpack.c.h.b16 %v1749
    %v2102 = vunpack.c.l.b16 %v1750
    %v2103 = vunpack.c.h.b16 %v1750
    %v2104 = vunpack.c.l.b16 %v1751
    %v2105 = vunpack.c.h.b16 %v1751
    %v2106 = vunpack.c.l.b16 %v1752
    %v2107 = vunpack.c.h.b16 %v1752
    %v2108 = vunpack.c.l.b16 %v1753
    %v2109 = vunpack.c.h.b16 %v1753
    %v2110 = vunpack.c.l.b16 %v1754
    %v2111 = vunpack.c.h.b16 %v1754
    %v2112 = vunpack.c.l.b16 %v1755
    %v2113 = vunpack.c.h.b16 %v1755
    %v2114 = vunpack.c.l.b16 %v1756
    %v2115 = vunpack.c.h.b16 %v1756
    %v2116 = vunpack.c.l.b16 %v1757
    %v2117 = vunpack.c.h.b16 %v1757
    %v2118 = vunpack.c.l.b16 %v1758
    %v2119 = vunpack.c.h.b16 %v1758
    %v2120 = vunpack.c.l.b16 %v1759
    %v2121 = vunpack.c.h.b16 %v1759
    %v2122 = vunpack.c.l.b16 %v1760
    %v2123 = vunpack.c.h.b16 %v1760
    %v2124 = vunpack.c.l.b16 %v1761
    %v2125 = vunpack.c.h.b16 %v1761
    %v2126 = vunpack.c.l.b16 %v1762
    %v2127 = vunpack.c.h.b16 %v1762
    %v2128 = vunpack.c.l.b16 %v1763
    %v2129 = vunpack.c.h.b16 %v1763
    %v2130 = vunpack.c.l.b16 %v1764
    %v2131 = vunpack.c.h.b16 %v1764
    %v2132 = vunpack.c.l.b16 %v1765
    %v2133 = vunpack.c.h.b16 %v1765
    %v2134 = vunpack.c.l.b16 %v1766
    %v2135 = vunpack.c.h.b16 %v1766
    %v2136 = vunpack.c.l.b16 %v1767
    %v2137 = vunpack.c.h.b16 %v1767
    %v2138 = vunpack.c.l.b16 %v1768
    %v2139 = vunpack.c.h.b16 %v1768
    %v2140 = vunpack.c.l.b16 %v1769
    %v2141 = vunpack.c.h.b16 %v1769
    %v2142 = vunpack.c.l.b16 %v1770
    %v2143 = vunpack.c.h.b16 %v1770
    %v2144 = vunpack.c.l.b16 %v1771
    %v2145 = vunpack.c.h.b16 %v1771
    %v2146 = vunpack.c.l.b16 %v1772
    %v2147 = vunpack.c.h.b16 %v1772
    %v2148 = vunpack.c.l.b16 %v1773
    %v2149 = vunpack.c.h.b16 %v1773
    %v2150 = vunpack.c.l.b16 %v1774
    %v2151 = vunpack.c.h.b16 %v1774
    %v2152 = vunpack.c.l.b16 %v1775
    %v2153 = vunpack.c.h.b16 %v1775
    %v2154 = vunpack.c.l.b16 %v1776
    %v2155 = vunpack.c.h.b16 %v1776
    %v2156 = vunpack.c.l.b16 %v1777
    %v2157 = vunpack.c.h.b16 %v1777
    %v2158 = vunpack.c.l.b16 %v1778
    %v2159 = vunpack.c.h.b16 %v1778
    %v2160 = vunpack.c.l.b16 %v1779
    %v2161 = vunpack.c.h.b16 %v1779
    %v2162 = vunpack.c.l.b16 %v1780
    %v2163 = vunpack.c.h.b16 %v1780
    %v2164 = vunpack.c.l.b16 %v1781
    %v2165 = vunpack.c.h.b16 %v1781
    %v2166 = vunpack.c.l.b16 %v1782
    %v2167 = vunpack.c.h.b16 %v1782
    %v2168 = vunpack.c.l.b16 %v1783
    %v2169 = vunpack.c.h.b16 %v1783
    %v2170 = vunpack.c.l.b16 %v1784
    %v2171 = vunpack.c.h.b16 %v1784
    %v2172 = vunpack.c.l.b16 %v1785
    %v2173 = vunpack.c.h.b16 %v1785
    %v2174 = vunpack.c.l.b16 %v1786
    %v2175 = vunpack.c.h.b16 %v1786
    %v2176 = vunpack.c.l.b16 %v1787
    %v2177 = vunpack.c.h.b16 %v1787
    %v2178 = vunpack.c.l.b16 %v1788
    %v2179 = vunpack.c.h.b16 %v1788
    %v2180 = vunpack.c.l.b16 %v1789
    %v2181 = vunpack.c.h.b16 %v1789
    %v2182 = vunpack.c.l.b16 %v1790
    %v2183 = vunpack.c.h.b16 %v1790
    %v2184 = vunpack.c.l.b16 %v1791
    %v2185 = vunpack.c.h.b16 %v1791
    %v2186 = vunpack.c.l.b16 %v1792
    %v2187 = vunpack.c.h.b16 %v1792
    %v2188 = vunpack.c.l.b16 %v1793
    %v2189 = vunpack.c.h.b16 %v1793
    %v2190 = vunpack.c.l.b16 %v1794
    %v2191 = vunpack.c.h.b16 %v1794
    %v2192 = vunpack.c.l.b16 %v1795
    %v2193 = vunpack.c.h.b16 %v1795
    %v2194 = vunpack.c.l.b16 %v1796
    %v2195 = vunpack.c.h.b16 %v1796
    %v2196 = vunpack.c.l.b16 %v1797
    %v2197 = vunpack.c.h.b16 %v1797
    %v2198 = vunpack.c.l.b16 %v1798
    %v2199 = vunpack.c.h.b16 %v1798
    %v2200 = vunpack.c.l.b16 %v1799
    %v2201 = vunpack.c.h.b16 %v1799
    %v2202 = vunpack.c.l.b16 %v1800
    %v2203 = vunpack.c.h.b16 %v1800
    %v2204 = vunpack.c.l.b16 %v1801
    %v2205 = vunpack.c.h.b16 %v1801
    %v2206 = vunpack.c.l.b16 %v1802
    %v2207 = vunpack.c.h.b16 %v1802
    %v2208 = vunpack.c.l.b16 %v1803
    %v2209 = vunpack.c.h.b16 %v1803
    %v2210 = vpack.c.b16 %v1958, %v1954
    %v2211 = vpack.c.b16 %v1959, %v1955
    %v2212 = vpack.c.b16 %v1960, %v1956
    %v2213 = vpack.c.b16 %v1961, %v1957
    %v2214 = vpack.c.b16 %v1966, %v1962
    %v2215 = vpack.c.b16 %v1967, %v1963
    %v2216 = vpack.c.b16 %v1968, %v1964
    %v2217 = vpack.c.b16 %v1969, %v1965
    %v2218 = vpack.c.b16 %v1974, %v1970
    %v2219 = vpack.c.b16 %v1975, %v1971
    %v2220 = vpack.c.b16 %v1976, %v1972
    %v2221 = vpack.c.b16 %v1977, %v1973
    %v2222 = vpack.c.b16 %v1982, %v1978
    %v2223 = vpack.c.b16 %v1983, %v1979
    %v2224 = vpack.c.b16 %v1984, %v1980
    %v2225 = vpack.c.b16 %v1985, %v1981
    %v2226 = vpack.c.b16 %v1990, %v1986
    %v2227 = vpack.c.b16 %v1991, %v1987
    %v2228 = vpack.c.b16 %v1992, %v1988
    %v2229 = vpack.c.b16 %v1993, %v1989
    %v2230 = vpack.c.b16 %v1998, %v1994
    %v2231 = vpack.c.b16 %v1999, %v1995
    %v2232 = vpack.c.b16 %v2000, %v1996
    %v2233 = vpack.c.b16 %v2001, %v1997
    %v2234 = vpack.c.b16 %v2006, %v2002
    %v2235 = vpack.c.b16 %v2007, %v2003
    %v2236 = vpack.c.b16 %v2008, %v2004
    %v2237 = vpack.c.b16 %v2009, %v2005
    %v2238 = vpack.c.b16 %v2014, %v2010
    %v2239 = vpack.c.b16 %v2015, %v2011
    %v2240 = vpack.c.b16 %v2016, %v2012
    %v2241 = vpack.c.b16 %v2017, %v2013
    %v2242 = vpack.c.b16 %v2022, %v2018
    %v2243 = vpack.c.b16 %v2023, %v2019
    %v2244 = vpack.c.b16 %v2024, %v2020
    %v2245 = vpack.c.b16 %v2025, %v2021
    %v2246 = vpack.c.b16 %v2030, %v2026
    %v2247 = vpack.c.b16 %v2031, %v2027
    %v2248 = vpack.c.b16 %v2032, %v2028
    %v2249 = vpack.c.b16 %v2033, %v2029
    %v2250 = vpack.c.b16 %v2038, %v2034
    %v2251 = vpack.c.b16 %v2039, %v2035
    %v2252 = vpack.c.b16 %v2040, %v2036
    %v2253 = vpack.c.b16 %v2041, %v2037
    %v2254 = vpack.c.b16 %v2046, %v2042
    %v2255 = vpack.c.b16 %v2047, %v2043
    %v2256 = vpack.c.b16 %v2048, %v2044
    %v2257 = vpack.c.b16 %v2049, %v2045
    %v2258 = vpack.c.b16 %v2054, %v2050
    %v2259 = vpack.c.b16 %v2055, %v2051
    %v2260 = vpack.c.b16 %v2056, %v2052
    %v2261 = vpack.c.b16 %v2057, %v2053
    %v2262 = vpack.c.b16 %v2062, %v2058
    %v2263 = vpack.c.b16 %v2063, %v2059
    %v2264 = vpack.c.b16 %v2064, %v2060
    %v2265 = vpack.c.b16 %v2065, %v2061
    %v2266 = vpack.c.b16 %v2070, %v2066
    %v2267 = vpack.c.b16 %v2071, %v2067
    %v2268 = vpack.c.b16 %v2072, %v2068
    %v2269 = vpack.c.b16 %v2073, %v2069
    %v2270 = vpack.c.b16 %v2078, %v2074
    %v2271 = vpack.c.b16 %v2079, %v2075
    %v2272 = vpack.c.b16 %v2080, %v2076
    %v2273 = vpack.c.b16 %v2081, %v2077
    %v2274 = vpack.c.b16 %v2086, %v2082
    %v2275 = vpack.c.b16 %v2087, %v2083
    %v2276 = vpack.c.b16 %v2088, %v2084
    %v2277 = vpack.c.b16 %v2089, %v2085
    %v2278 = vpack.c.b16 %v2094, %v2090
    %v2279 = vpack.c.b16 %v2095, %v2091
    %v2280 = vpack.c.b16 %v2096, %v2092
    %v2281 = vpack.c.b16 %v2097, %v2093
    %v2282 = vpack.c.b16 %v2102, %v2098
    %v2283 = vpack.c.b16 %v2103, %v2099
    %v2284 = vpack.c.b16 %v2104, %v2100
    %v2285 = vpack.c.b16 %v2105, %v2101
    %v2286 = vpack.c.b16 %v2110, %v2106
    %v2287 = vpack.c.b16 %v2111, %v2107
    %v2288 = vpack.c.b16 %v2112, %v2108
    %v2289 = vpack.c.b16 %v2113, %v2109
    %v2290 = vpack.c.b16 %v2118, %v2114
    %v2291 = vpack.c.b16 %v2119, %v2115
    %v2292 = vpack.c.b16 %v2120, %v2116
    %v2293 = vpack.c.b16 %v2121, %v2117
    %v2294 = vpack.c.b16 %v2126, %v2122
    %v2295 = vpack.c.b16 %v2127, %v2123
    %v2296 = vpack.c.b16 %v2128, %v2124
    %v2297 = vpack.c.b16 %v2129, %v2125
    %v2298 = vpack.c.b16 %v2134, %v2130
    %v2299 = vpack.c.b16 %v2135, %v2131
    %v2300 = vpack.c.b16 %v2136, %v2132
    %v2301 = vpack.c.b16 %v2137, %v2133
    %v2302 = vpack.c.b16 %v2142, %v2138
    %v2303 = vpack.c.b16 %v2143, %v2139
    %v2304 = vpack.c.b16 %v2144, %v2140
    %v2305 = vpack.c.b16 %v2145, %v2141
    %v2306 = vpack.c.b16 %v2150, %v2146
    %v2307 = vpack.c.b16 %v2151, %v2147
    %v2308 = vpack.c.b16 %v2152, %v2148
    %v2309 = vpack.c.b16 %v2153, %v2149
    %v2310 = vpack.c.b16 %v2158, %v2154
    %v2311 = vpack.c.b16 %v2159, %v2155
    %v2312 = vpack.c.b16 %v2160, %v2156
    %v2313 = vpack.c.b16 %v2161, %v2157
    %v2314 = vpack.c.b16 %v2166, %v2162
    %v2315 = vpack.c.b16 %v2167, %v2163
    %v2316 = vpack.c.b16 %v2168, %v2164
    %v2317 = vpack.c.b16 %v2169, %v2165
    %v2318 = vpack.c.b16 %v2174, %v2170
    %v2319 = vpack.c.b16 %v2175, %v2171
    %v2320 = vpack.c.b16 %v2176, %v2172
    %v2321 = vpack.c.b16 %v2177, %v2173
    %v2322 = vpack.c.b16 %v2182, %v2178
    %v2323 = vpack.c.b16 %v2183, %v2179
    %v2324 = vpack.c.b16 %v2184, %v2180
    %v2325 = vpack.c.b16 %v2185, %v2181
    %v2326 = vpack.c.b16 %v2190, %v2186
    %v2327 = vpack.c.b16 %v2191, %v2187
    %v2328 = vpack.c.b16 %v2192, %v2188
    %v2329 = vpack.c.b16 %v2193, %v2189
    %v2330 = vpack.c.b16 %v2198, %v2194
    %v2331 = vpack.c.b16 %v2199, %v2195
    %v2332 = vpack.c.b16 %v2200, %v2196
    %v2333 = vpack.c.b16 %v2201, %v2197
    %v2334 = vpack.c.b16 %v2206, %v2202
    %v2335 = vpack.c.b16 %v2207, %v2203
    %v2336 = vpack.c.b16 %v2208, %v2204
    %v2337 = vpack.c.b16 %v2209, %v2205
    %2466 = vmatprep.subr.bf16.mxu0 %v2239
    %2467 = vmatpush1.bf16.msra.mxu0 %v2238
    %2468 = vmatprep.subr.bf16.mxu0 %v2235
    %2469 = vmatpush1.bf16.msra.mxu0 %v2234
    %2470 = vmatprep.subr.bf16.mxu0 %v2231
    %2471 = vmatpush1.bf16.msra.mxu0 %v2230
    %2472 = vmatprep.subr.bf16.mxu0 %v2227
    %2473 = vmatpush1.bf16.msra.mxu0 %v2226
    %2474 = vmatprep.subr.bf16.mxu0 %v2223
    %2475 = vmatpush1.bf16.msra.mxu0 %v2222
    %2476 = vmatprep.subr.bf16.mxu0 %v2219
    %2477 = vmatpush1.bf16.msra.mxu0 %v2218
    %2478 = vmatprep.subr.bf16.mxu0 %v2215
    %2479 = vmatpush1.bf16.msra.mxu0 %v2214
    %2480 = vmatprep.subr.bf16.mxu0 %v2211
    %2481 = vmatpush1.bf16.msra.mxu0 %v2210
    %2482 = vmatprep.subr.bf16.mxu0 %v2271
    %2483 = vmatpush2.bf16.msra.mxu0 %v2270
    %2484 = vmatprep.subr.bf16.mxu0 %v2267
    %2485 = vmatpush2.bf16.msra.mxu0 %v2266
    %2486 = vmatprep.subr.bf16.mxu0 %v2263
    %2487 = vmatpush2.bf16.msra.mxu0 %v2262
    %2488 = vmatprep.subr.bf16.mxu0 %v2259
    %2489 = vmatpush2.bf16.msra.mxu0 %v2258
    %2490 = vmatprep.subr.bf16.mxu0 %v2255
    %2491 = vmatpush2.bf16.msra.mxu0 %v2254
    %2492 = vmatprep.subr.bf16.mxu0 %v2251
    %2493 = vmatpush2.bf16.msra.mxu0 %v2250
    %2494 = vmatprep.subr.bf16.mxu0 %v2247
    %2495 = vmatpush2.bf16.msra.mxu0 %v2246
    %2496 = vmatprep.subr.bf16.mxu0 %v2243
    %2497 = vmatpush2.bf16.msra.mxu0 %v2242
    %2498 = vmatprep.mubr.bf16.mxu0 %v1673
    %2499 = vmatmul.mubr.bf16.gmra.mxu0 %v1672
    %v2500 = vpop.f32.mrf.mxu0
    %v2501 = vadd.f32 %v1809, %v2500
    %v2502 = vpop.f32.mrf.mxu0
    %v2503 = vadd.f32 %v1813, %v2502
    %v2504 = vpop.f32.mrf.mxu0
    %v2505 = vadd.f32 %v1809, %v2504
    %v2506 = vpop.f32.mrf.mxu0
    %v2507 = vadd.f32 %v1813, %v2506
    %2508 = vdwg.mxu0
    %2509 = vmatprep.subr.bf16.mxu0 %v2303
    %2510 = vmatpush1.bf16.msra.mxu0 %v2302
    %2511 = vmatprep.subr.bf16.mxu0 %v2299
    %2512 = vmatpush1.bf16.msra.mxu0 %v2298
    %2513 = vmatprep.subr.bf16.mxu0 %v2295
    %2514 = vmatpush1.bf16.msra.mxu0 %v2294
    %2515 = vmatprep.subr.bf16.mxu0 %v2291
    %2516 = vmatpush1.bf16.msra.mxu0 %v2290
    %2517 = vmatprep.subr.bf16.mxu0 %v2287
    %2518 = vmatpush1.bf16.msra.mxu0 %v2286
    %2519 = vmatprep.subr.bf16.mxu0 %v2283
    %2520 = vmatpush1.bf16.msra.mxu0 %v2282
    %2521 = vmatprep.subr.bf16.mxu0 %v2279
    %2522 = vmatpush1.bf16.msra.mxu0 %v2278
    %2523 = vmatprep.subr.bf16.mxu0 %v2275
    %2524 = vmatpush1.bf16.msra.mxu0 %v2274
    %2525 = vmatprep.subr.bf16.mxu0 %v2335
    %2526 = vmatpush2.bf16.msra.mxu0 %v2334
    %2527 = vmatprep.subr.bf16.mxu0 %v2331
    %2528 = vmatpush2.bf16.msra.mxu0 %v2330
    %2529 = vmatprep.subr.bf16.mxu0 %v2327
    %2530 = vmatpush2.bf16.msra.mxu0 %v2326
    %2531 = vmatprep.subr.bf16.mxu0 %v2323
    %2532 = vmatpush2.bf16.msra.mxu0 %v2322
    %2533 = vmatprep.subr.bf16.mxu0 %v2319
    %2534 = vmatpush2.bf16.msra.mxu0 %v2318
    %2535 = vmatprep.subr.bf16.mxu0 %v2315
    %2536 = vmatpush2.bf16.msra.mxu0 %v2314
    %2537 = vmatprep.subr.bf16.mxu0 %v2311
    %2538 = vmatpush2.bf16.msra.mxu0 %v2310
    %2539 = vmatprep.subr.bf16.mxu0 %v2307
    %2540 = vmatpush2.bf16.msra.mxu0 %v2306
    %2541 = vmatprep.mubr.bf16.mxu0 %v1675
    %2542 = vmatmul.mubr.bf16.gmra.mxu0 %v1674
    %v2543 = vpop.f32.mrf.mxu0
    %v2544 = vadd.f32 %v2501, %v2543
    %v2545 = vpop.f32.mrf.mxu0
    %v2546 = vadd.f32 %v2503, %v2545
    %v2547 = vpop.f32.mrf.mxu0
    %v2548 = vadd.f32 %v2505, %v2547
    %v2549 = vpop.f32.mrf.mxu0
    %v2550 = vadd.f32 %v2507, %v2549
    %2551 = vdwg.mxu0
    %2552 = vmatprep.subr.bf16.mxu0 %v2241
    %2553 = vmatpush1.bf16.msra.mxu0 %v2240
    %2554 = vmatprep.subr.bf16.mxu0 %v2237
    %2555 = vmatpush1.bf16.msra.mxu0 %v2236
    %2556 = vmatprep.subr.bf16.mxu0 %v2233
    %2557 = vmatpush1.bf16.msra.mxu0 %v2232
    %2558 = vmatprep.subr.bf16.mxu0 %v2229
    %2559 = vmatpush1.bf16.msra.mxu0 %v2228
    %2560 = vmatprep.subr.bf16.mxu0 %v2225
    %2561 = vmatpush1.bf16.msra.mxu0 %v2224
    %2562 = vmatprep.subr.bf16.mxu0 %v2221
    %2563 = vmatpush1.bf16.msra.mxu0 %v2220
    %2564 = vmatprep.subr.bf16.mxu0 %v2217
    %2565 = vmatpush1.bf16.msra.mxu0 %v2216
    %2566 = vmatprep.subr.bf16.mxu0 %v2213
    %2567 = vmatpush1.bf16.msra.mxu0 %v2212
    %2568 = vmatprep.subr.bf16.mxu0 %v2273
    %2569 = vmatpush2.bf16.msra.mxu0 %v2272
    %2570 = vmatprep.subr.bf16.mxu0 %v2269
    %2571 = vmatpush2.bf16.msra.mxu0 %v2268
    %2572 = vmatprep.subr.bf16.mxu0 %v2265
    %2573 = vmatpush2.bf16.msra.mxu0 %v2264
    %2574 = vmatprep.subr.bf16.mxu0 %v2261
    %2575 = vmatpush2.bf16.msra.mxu0 %v2260
    %2576 = vmatprep.subr.bf16.mxu0 %v2257
    %2577 = vmatpush2.bf16.msra.mxu0 %v2256
    %2578 = vmatprep.subr.bf16.mxu0 %v2253
    %2579 = vmatpush2.bf16.msra.mxu0 %v2252
    %2580 = vmatprep.subr.bf16.mxu0 %v2249
    %2581 = vmatpush2.bf16.msra.mxu0 %v2248
    %2582 = vmatprep.subr.bf16.mxu0 %v2245
    %2583 = vmatpush2.bf16.msra.mxu0 %v2244
    %2584 = vmatprep.mubr.bf16.mxu0 %v1673
    %2585 = vmatmul.mubr.bf16.gmra.mxu0 %v1672
    %v2586 = vpop.f32.mrf.mxu0
    %v2587 = vadd.f32 %v1817, %v2586
    %v2588 = vpop.f32.mrf.mxu0
    %v2589 = vadd.f32 %v1821, %v2588
    %v2590 = vpop.f32.mrf.mxu0
    %v2591 = vadd.f32 %v1817, %v2590
    %v2592 = vpop.f32.mrf.mxu0
    %v2593 = vadd.f32 %v1821, %v2592
    %2594 = vdwg.mxu0
    %2595 = vmatprep.subr.bf16.mxu0 %v2305
    %2596 = vmatpush1.bf16.msra.mxu0 %v2304
    %2597 = vmatprep.subr.bf16.mxu0 %v2301
    %2598 = vmatpush1.bf16.msra.mxu0 %v2300
    %2599 = vmatprep.subr.bf16.mxu0 %v2297
    %2600 = vmatpush1.bf16.msra.mxu0 %v2296
    %2601 = vmatprep.subr.bf16.mxu0 %v2293
    %2602 = vmatpush1.bf16.msra.mxu0 %v2292
    %2603 = vmatprep.subr.bf16.mxu0 %v2289
    %2604 = vmatpush1.bf16.msra.mxu0 %v2288
    %2605 = vmatprep.subr.bf16.mxu0 %v2285
    %2606 = vmatpush1.bf16.msra.mxu0 %v2284
    %2607 = vmatprep.subr.bf16.mxu0 %v2281
    %2608 = vmatpush1.bf16.msra.mxu0 %v2280
    %2609 = vmatprep.subr.bf16.mxu0 %v2277
    %2610 = vmatpush1.bf16.msra.mxu0 %v2276
    %2611 = vmatprep.subr.bf16.mxu0 %v2337
    %2612 = vmatpush2.bf16.msra.mxu0 %v2336
    %2613 = vmatprep.subr.bf16.mxu0 %v2333
    %2614 = vmatpush2.bf16.msra.mxu0 %v2332
    %2615 = vmatprep.subr.bf16.mxu0 %v2329
    %2616 = vmatpush2.bf16.msra.mxu0 %v2328
    %2617 = vmatprep.subr.bf16.mxu0 %v2325
    %2618 = vmatpush2.bf16.msra.mxu0 %v2324
    %2619 = vmatprep.subr.bf16.mxu0 %v2321
    %2620 = vmatpush2.bf16.msra.mxu0 %v2320
    %2621 = vmatprep.subr.bf16.mxu0 %v2317
    %2622 = vmatpush2.bf16.msra.mxu0 %v2316
    %2623 = vmatprep.subr.bf16.mxu0 %v2313
    %2624 = vmatpush2.bf16.msra.mxu0 %v2312
    %2625 = vmatprep.subr.bf16.mxu0 %v2309
    %2626 = vmatpush2.bf16.msra.mxu0 %v2308
    %2627 = vmatprep.mubr.bf16.mxu0 %v1675
    %2628 = vmatmul.mubr.bf16.gmra.mxu0 %v1674
    %v2629 = vpop.f32.mrf.mxu0
    %v2630 = vadd.f32 %v2587, %v2629
    %v2631 = vpop.f32.mrf.mxu0
    %v2632 = vadd.f32 %v2589, %v2631
    %v2633 = vpop.f32.mrf.mxu0
    %v2634 = vadd.f32 %v2591, %v2633
    %v2635 = vpop.f32.mrf.mxu0
    %v2636 = vadd.f32 %v2593, %v2635
    %2637 = vdwg.mxu0
    %v2638 = vmax.f32 %v2544, 0.0
    %v2639 = vmax.f32 %v2546, 0.0
    %v2640 = vmax.f32 %v2630, 0.0
    %v2641 = vmax.f32 %v2632, 0.0
    %v2642 = vmax.f32 %v2548, 0.0
    %v2643 = vmax.f32 %v2550, 0.0
    %v2644 = vmax.f32 %v2634, 0.0
    %v2645 = vmax.f32 %v2636, 0.0
    %v2646 = vpack.c.bf16 %v2642, %v2638
    %v2647 = vpack.c.bf16 %v2643, %v2639
    %v2648 = vpack.c.bf16 %v2644, %v2640
    %v2649 = vpack.c.bf16 %v2645, %v2641
    %v2654 = vunpack.c.l.b16 %v2646
    %v2655 = vunpack.c.l.b16 %v2647
    %v2656 = vunpack.c.l.b16 %v2648
    %v2657 = vunpack.c.l.b16 %v2649
    %v2658 = vunpack.c.h.b16 %v2646
    %v2659 = vunpack.c.h.b16 %v2647
    %v2660 = vunpack.c.h.b16 %v2648
    %v2661 = vunpack.c.h.b16 %v2649
    %v2662 = vpack.c.b16 %v2655, %v2654
    %v2663 = vpack.c.b16 %v2657, %v2656
    %v2664 = vpack.c.b16 %v2659, %v2658
    %v2665 = vpack.c.b16 %v2661, %v2660
    %2670 = vst [vmem:[#allocation12] sm:$0xff] %v2662
    %2671 = vst [vmem:[#allocation12 + $0x8] sm:$0xff] %v2663
    %2672 = vst [vmem:[#allocation12 + $0x10] sm:$0xff] %v2664
    %2673 = vst [vmem:[#allocation12 + $0x18] sm:$0xff] %v2665
    %v2674 = vld [vmem:[#allocation10] sm:$0xf]
    %v2675 = vld [vmem:[#allocation10 + $0x4] sm:$0xf]
    %v2676 = vld [vmem:[#allocation10 + $0x8] sm:$0xf]
    %v2677 = vld [vmem:[#allocation10 + $0xc] sm:$0xf]
    %v2678 = vld [vmem:[#allocation10 + $0x10] sm:$0xf]
    %v2679 = vld [vmem:[#allocation10 + $0x14] sm:$0xf]
    %v2680 = vld [vmem:[#allocation10 + $0x18] sm:$0xf]
    %v2681 = vld [vmem:[#allocation10 + $0x1c] sm:$0xf]
    %v2682 = vld [vmem:[#allocation10 + $0x20] sm:$0xf]
    %v2683 = vld [vmem:[#allocation10 + $0x24] sm:$0xf]
    %v2684 = vld [vmem:[#allocation10 + $0x28] sm:$0xf]
    %v2685 = vld [vmem:[#allocation10 + $0x2c] sm:$0xf]
    %v2686 = vld [vmem:[#allocation10 + $0x30] sm:$0xf]
    %v2687 = vld [vmem:[#allocation10 + $0x34] sm:$0xf]
    %v2688 = vld [vmem:[#allocation10 + $0x38] sm:$0xf]
    %v2689 = vld [vmem:[#allocation10 + $0x3c] sm:$0xf]
    %v2690 = vld [vmem:[#allocation10 + $0x40] sm:$0xf]
    %v2691 = vld [vmem:[#allocation10 + $0x44] sm:$0xf]
    %v2692 = vld [vmem:[#allocation10 + $0x48] sm:$0xf]
    %v2693 = vld [vmem:[#allocation10 + $0x4c] sm:$0xf]
    %v2694 = vld [vmem:[#allocation10 + $0x50] sm:$0xf]
    %v2695 = vld [vmem:[#allocation10 + $0x54] sm:$0xf]
    %v2696 = vld [vmem:[#allocation10 + $0x58] sm:$0xf]
    %v2697 = vld [vmem:[#allocation10 + $0x5c] sm:$0xf]
    %v2698 = vld [vmem:[#allocation10 + $0x60] sm:$0xf]
    %v2699 = vld [vmem:[#allocation10 + $0x64] sm:$0xf]
    %v2700 = vld [vmem:[#allocation10 + $0x68] sm:$0xf]
    %v2701 = vld [vmem:[#allocation10 + $0x6c] sm:$0xf]
    %v2702 = vld [vmem:[#allocation10 + $0x70] sm:$0xf]
    %v2703 = vld [vmem:[#allocation10 + $0x74] sm:$0xf]
    %v2704 = vld [vmem:[#allocation10 + $0x78] sm:$0xf]
    %v2705 = vld [vmem:[#allocation10 + $0x7c] sm:$0xf]
    %v2706 = vld [vmem:[#allocation10 + $0x80] sm:$0xf]
    %v2707 = vld [vmem:[#allocation10 + $0x84] sm:$0xf]
    %v2708 = vld [vmem:[#allocation10 + $0x88] sm:$0xf]
    %v2709 = vld [vmem:[#allocation10 + $0x8c] sm:$0xf]
    %v2710 = vld [vmem:[#allocation10 + $0x90] sm:$0xf]
    %v2711 = vld [vmem:[#allocation10 + $0x94] sm:$0xf]
    %v2712 = vld [vmem:[#allocation10 + $0x98] sm:$0xf]
    %v2713 = vld [vmem:[#allocation10 + $0x9c] sm:$0xf]
    %v2714 = vld [vmem:[#allocation10 + $0xa0] sm:$0xf]
    %v2715 = vld [vmem:[#allocation10 + $0xa4] sm:$0xf]
    %v2716 = vld [vmem:[#allocation10 + $0xa8] sm:$0xf]
    %v2717 = vld [vmem:[#allocation10 + $0xac] sm:$0xf]
    %v2718 = vld [vmem:[#allocation10 + $0xb0] sm:$0xf]
    %v2719 = vld [vmem:[#allocation10 + $0xb4] sm:$0xf]
    %v2720 = vld [vmem:[#allocation10 + $0xb8] sm:$0xf]
    %v2721 = vld [vmem:[#allocation10 + $0xbc] sm:$0xf]
    %v2722 = vld [vmem:[#allocation10 + $0xc0] sm:$0xf]
    %v2723 = vld [vmem:[#allocation10 + $0xc4] sm:$0xf]
    %v2724 = vld [vmem:[#allocation10 + $0xc8] sm:$0xf]
    %v2725 = vld [vmem:[#allocation10 + $0xcc] sm:$0xf]
    %v2726 = vld [vmem:[#allocation10 + $0xd0] sm:$0xf]
    %v2727 = vld [vmem:[#allocation10 + $0xd4] sm:$0xf]
    %v2728 = vld [vmem:[#allocation10 + $0xd8] sm:$0xf]
    %v2729 = vld [vmem:[#allocation10 + $0xdc] sm:$0xf]
    %v2730 = vld [vmem:[#allocation10 + $0xe0] sm:$0xf]
    %v2731 = vld [vmem:[#allocation10 + $0xe4] sm:$0xf]
    %v2732 = vld [vmem:[#allocation10 + $0xe8] sm:$0xf]
    %v2733 = vld [vmem:[#allocation10 + $0xec] sm:$0xf]
    %v2734 = vld [vmem:[#allocation10 + $0xf0] sm:$0xf]
    %v2735 = vld [vmem:[#allocation10 + $0xf4] sm:$0xf]
    %v2736 = vld [vmem:[#allocation10 + $0xf8] sm:$0xf]
    %v2737 = vld [vmem:[#allocation10 + $0xfc] sm:$0xf]
    %v2738 = vld [vmem:[%s6] sm:$0x1]
    %v2740 = vlaneseq
    %v2741 = vshrl.u32 %v2740, 7
    %v2742 = vsub.s32 0, %v2741
    %v2743 = vrot.slane %v2738, %v2742
    %v2809 = vunpack.c.l.b16 %v2674
    %v2810 = vunpack.c.l.b16 %v2675
    %v2811 = vunpack.c.l.b16 %v2676
    %v2812 = vunpack.c.l.b16 %v2677
    %v2813 = vunpack.c.l.b16 %v2678
    %v2814 = vunpack.c.l.b16 %v2679
    %v2815 = vunpack.c.l.b16 %v2680
    %v2816 = vunpack.c.l.b16 %v2681
    %v2817 = vunpack.c.l.b16 %v2682
    %v2818 = vunpack.c.l.b16 %v2683
    %v2819 = vunpack.c.l.b16 %v2684
    %v2820 = vunpack.c.l.b16 %v2685
    %v2821 = vunpack.c.l.b16 %v2686
    %v2822 = vunpack.c.l.b16 %v2687
    %v2823 = vunpack.c.l.b16 %v2688
    %v2824 = vunpack.c.l.b16 %v2689
    %v2825 = vunpack.c.l.b16 %v2690
    %v2826 = vunpack.c.l.b16 %v2691
    %v2827 = vunpack.c.l.b16 %v2692
    %v2828 = vunpack.c.l.b16 %v2693
    %v2829 = vunpack.c.l.b16 %v2694
    %v2830 = vunpack.c.l.b16 %v2695
    %v2831 = vunpack.c.l.b16 %v2696
    %v2832 = vunpack.c.l.b16 %v2697
    %v2833 = vunpack.c.l.b16 %v2698
    %v2834 = vunpack.c.l.b16 %v2699
    %v2835 = vunpack.c.l.b16 %v2700
    %v2836 = vunpack.c.l.b16 %v2701
    %v2837 = vunpack.c.l.b16 %v2702
    %v2838 = vunpack.c.l.b16 %v2703
    %v2839 = vunpack.c.l.b16 %v2704
    %v2840 = vunpack.c.l.b16 %v2705
    %v2841 = vunpack.c.l.b16 %v2706
    %v2842 = vunpack.c.l.b16 %v2707
    %v2843 = vunpack.c.l.b16 %v2708
    %v2844 = vunpack.c.l.b16 %v2709
    %v2845 = vunpack.c.l.b16 %v2710
    %v2846 = vunpack.c.l.b16 %v2711
    %v2847 = vunpack.c.l.b16 %v2712
    %v2848 = vunpack.c.l.b16 %v2713
    %v2849 = vunpack.c.l.b16 %v2714
    %v2850 = vunpack.c.l.b16 %v2715
    %v2851 = vunpack.c.l.b16 %v2716
    %v2852 = vunpack.c.l.b16 %v2717
    %v2853 = vunpack.c.l.b16 %v2718
    %v2854 = vunpack.c.l.b16 %v2719
    %v2855 = vunpack.c.l.b16 %v2720
    %v2856 = vunpack.c.l.b16 %v2721
    %v2857 = vunpack.c.l.b16 %v2722
    %v2858 = vunpack.c.l.b16 %v2723
    %v2859 = vunpack.c.l.b16 %v2724
    %v2860 = vunpack.c.l.b16 %v2725
    %v2861 = vunpack.c.l.b16 %v2726
    %v2862 = vunpack.c.l.b16 %v2727
    %v2863 = vunpack.c.l.b16 %v2728
    %v2864 = vunpack.c.l.b16 %v2729
    %v2865 = vunpack.c.l.b16 %v2730
    %v2866 = vunpack.c.l.b16 %v2731
    %v2867 = vunpack.c.l.b16 %v2732
    %v2868 = vunpack.c.l.b16 %v2733
    %v2869 = vunpack.c.l.b16 %v2734
    %v2870 = vunpack.c.l.b16 %v2735
    %v2871 = vunpack.c.l.b16 %v2736
    %v2872 = vunpack.c.l.b16 %v2737
    %v2873 = vpack.c.b16 %v2810, %v2809
    %v2874 = vpack.c.b16 %v2812, %v2811
    %v2875 = vpack.c.b16 %v2814, %v2813
    %v2876 = vpack.c.b16 %v2816, %v2815
    %v2877 = vpack.c.b16 %v2818, %v2817
    %v2878 = vpack.c.b16 %v2820, %v2819
    %v2879 = vpack.c.b16 %v2822, %v2821
    %v2880 = vpack.c.b16 %v2824, %v2823
    %v2881 = vpack.c.b16 %v2826, %v2825
    %v2882 = vpack.c.b16 %v2828, %v2827
    %v2883 = vpack.c.b16 %v2830, %v2829
    %v2884 = vpack.c.b16 %v2832, %v2831
    %v2885 = vpack.c.b16 %v2834, %v2833
    %v2886 = vpack.c.b16 %v2836, %v2835
    %v2887 = vpack.c.b16 %v2838, %v2837
    %v2888 = vpack.c.b16 %v2840, %v2839
    %v2889 = vpack.c.b16 %v2842, %v2841
    %v2890 = vpack.c.b16 %v2844, %v2843
    %v2891 = vpack.c.b16 %v2846, %v2845
    %v2892 = vpack.c.b16 %v2848, %v2847
    %v2893 = vpack.c.b16 %v2850, %v2849
    %v2894 = vpack.c.b16 %v2852, %v2851
    %v2895 = vpack.c.b16 %v2854, %v2853
    %v2896 = vpack.c.b16 %v2856, %v2855
    %v2897 = vpack.c.b16 %v2858, %v2857
    %v2898 = vpack.c.b16 %v2860, %v2859
    %v2899 = vpack.c.b16 %v2862, %v2861
    %v2900 = vpack.c.b16 %v2864, %v2863
    %v2901 = vpack.c.b16 %v2866, %v2865
    %v2902 = vpack.c.b16 %v2868, %v2867
    %v2903 = vpack.c.b16 %v2870, %v2869
    %v2904 = vpack.c.b16 %v2872, %v2871
    %2937 = vmatprep.subr.bf16.mxu0 0
    %2938 = vmatpush1.bf16.msra.mxu0 %v2880
    %2939 = vmatprep.subr.bf16.mxu0 0
    %2940 = vmatpush1.bf16.msra.mxu0 %v2879
    %2941 = vmatprep.subr.bf16.mxu0 0
    %2942 = vmatpush1.bf16.msra.mxu0 %v2878
    %2943 = vmatprep.subr.bf16.mxu0 0
    %2944 = vmatpush1.bf16.msra.mxu0 %v2877
    %2945 = vmatprep.subr.bf16.mxu0 0
    %2946 = vmatpush1.bf16.msra.mxu0 %v2876
    %2947 = vmatprep.subr.bf16.mxu0 0
    %2948 = vmatpush1.bf16.msra.mxu0 %v2875
    %2949 = vmatprep.subr.bf16.mxu0 0
    %2950 = vmatpush1.bf16.msra.mxu0 %v2874
    %2951 = vmatprep.subr.bf16.mxu0 0
    %2952 = vmatpush1.bf16.msra.mxu0 %v2873
    %2953 = vmatprep.subr.bf16.mxu0 0
    %2954 = vmatpush2.bf16.msra.mxu0 %v2888
    %2955 = vmatprep.subr.bf16.mxu0 0
    %2956 = vmatpush2.bf16.msra.mxu0 %v2887
    %2957 = vmatprep.subr.bf16.mxu0 0
    %2958 = vmatpush2.bf16.msra.mxu0 %v2886
    %2959 = vmatprep.subr.bf16.mxu0 0
    %2960 = vmatpush2.bf16.msra.mxu0 %v2885
    %2961 = vmatprep.subr.bf16.mxu0 0
    %2962 = vmatpush2.bf16.msra.mxu0 %v2884
    %2963 = vmatprep.subr.bf16.mxu0 0
    %2964 = vmatpush2.bf16.msra.mxu0 %v2883
    %2965 = vmatprep.subr.bf16.mxu0 0
    %2966 = vmatpush2.bf16.msra.mxu0 %v2882
    %2967 = vmatprep.subr.bf16.mxu0 0
    %2968 = vmatpush2.bf16.msra.mxu0 %v2881
    %2969 = vmatprep.mubr.bf16.mxu0 %v2647
    %2970 = vmatmul.mubr.bf16.gmra.mxu0 %v2646
    %v2971 = vpop.f32.mrf.mxu0
    %v2972 = vadd.f32 %v2743, %v2971
    %v2973 = vpop.f32.mrf.mxu0
    %v2974 = vpop.f32.mrf.mxu0
    %v2975 = vadd.f32 %v2743, %v2974
    %v2976 = vpop.f32.mrf.mxu0
    %2977 = vdwg.mxu0
    %2978 = vmatprep.subr.bf16.mxu0 0
    %2979 = vmatpush1.bf16.msra.mxu0 %v2896
    %2980 = vmatprep.subr.bf16.mxu0 0
    %2981 = vmatpush1.bf16.msra.mxu0 %v2895
    %2982 = vmatprep.subr.bf16.mxu0 0
    %2983 = vmatpush1.bf16.msra.mxu0 %v2894
    %2984 = vmatprep.subr.bf16.mxu0 0
    %2985 = vmatpush1.bf16.msra.mxu0 %v2893
    %2986 = vmatprep.subr.bf16.mxu0 0
    %2987 = vmatpush1.bf16.msra.mxu0 %v2892
    %2988 = vmatprep.subr.bf16.mxu0 0
    %2989 = vmatpush1.bf16.msra.mxu0 %v2891
    %2990 = vmatprep.subr.bf16.mxu0 0
    %2991 = vmatpush1.bf16.msra.mxu0 %v2890
    %2992 = vmatprep.subr.bf16.mxu0 0
    %2993 = vmatpush1.bf16.msra.mxu0 %v2889
    %2994 = vmatprep.subr.bf16.mxu0 0
    %2995 = vmatpush2.bf16.msra.mxu0 %v2904
    %2996 = vmatprep.subr.bf16.mxu0 0
    %2997 = vmatpush2.bf16.msra.mxu0 %v2903
    %2998 = vmatprep.subr.bf16.mxu0 0
    %2999 = vmatpush2.bf16.msra.mxu0 %v2902
    %3000 = vmatprep.subr.bf16.mxu0 0
    %3001 = vmatpush2.bf16.msra.mxu0 %v2901
    %3002 = vmatprep.subr.bf16.mxu0 0
    %3003 = vmatpush2.bf16.msra.mxu0 %v2900
    %3004 = vmatprep.subr.bf16.mxu0 0
    %3005 = vmatpush2.bf16.msra.mxu0 %v2899
    %3006 = vmatprep.subr.bf16.mxu0 0
    %3007 = vmatpush2.bf16.msra.mxu0 %v2898
    %3008 = vmatprep.subr.bf16.mxu0 0
    %3009 = vmatpush2.bf16.msra.mxu0 %v2897
    %3010 = vmatprep.mubr.bf16.mxu0 %v2649
    %3011 = vmatmul.mubr.bf16.gmra.mxu0 %v2648
    %v3012 = vpop.f32.mrf.mxu0
    %v3013 = vadd.f32 %v2972, %v3012
    %v3014 = vpop.f32.mrf.mxu0
    %v3015 = vpop.f32.mrf.mxu0
    %v3016 = vadd.f32 %v2975, %v3015
    %v3017 = vpop.f32.mrf.mxu0
    %3018 = vdwg.mxu0
    %3019 = vst [vmem:[#allocation11] sm:$0xff] %v3013
    %3020 = vst [vmem:[#allocation11 + $0x8] sm:$0xff] %v3016
    // Predicated region
    $region50: #{tpu_custom_call.1} parent=1 // pred_check
      _
    $region51: #{tpu_custom_call.1} parent=1 // pred_check_branch
      %3022 = sbr.rel (0) target = $region53
    $region52: #{tpu_custom_call.1} parent=1 // pred_region
      %s3024 = ssub.s32 256, 256
      %3025 = vsyncadd [#allocation4], %s3024
      %s3026 = sshll.u32 [#allocation11], 4
      %s3027 = int_to_ptr.vmem [resolvable:$true] %s3026
      %3032 = dma.vmem_to_hbm [thread:$0]  %s3027, 256, %s7, [#allocation4], 128, 128, 8
    $region53: #{tpu_custom_call.1} parent=1 // pred_fallthru
      _
    // Predicated region
    $region54: #{tpu_custom_call.1} parent=1 // pred_check
      _
    $region55: #{tpu_custom_call.1} parent=1 // pred_check_branch
      %3034 = sbr.rel (0) target = $region57
    $region56: #{tpu_custom_call.1} parent=1 // pred_region
      %s3036 = ssub.s32 512, 512
      %3037 = vsyncadd [#allocation13], %s3036
      %s3038 = sshll.u32 [#allocation12], 4
      %s3039 = int_to_ptr.vmem [resolvable:$true] %s3038
      %3044 = dma.vmem_to_hbm [thread:$0]  %s3039, 512, %s8, [#allocation13], 256, 256, 16
    $region57: #{tpu_custom_call.1} parent=1 // pred_fallthru
      _
    // Predicated region
    $region58: #{tpu_custom_call.1} parent=1 // pred_check
      _
    $region59: #{tpu_custom_call.1} parent=1 // pred_check_branch
      %3046 = sbr.rel (0) target = $region61
    $region60: #{tpu_custom_call.1} parent=1 // pred_region
      %3047 = dma.done [#allocation4], 256
    $region61: #{tpu_custom_call.1} parent=1 // pred_fallthru
      _
    // Predicated region
    $region62: #{tpu_custom_call.1} parent=1 // pred_check
      _
    $region63: #{tpu_custom_call.1} parent=1 // pred_check_branch
      %3049 = sbr.rel (0) target = $region65
    $region64: #{tpu_custom_call.1} parent=1 // pred_region
      %3050 = dma.done [#allocation13], 512
    $region65: #{tpu_custom_call.1} parent=1 // pred_fallthru
      _
    %3051 = vsyncpa [#allocation3], 1
    %3052 = vsyncpa [#allocation6], 1
    %3053 = vsyncpa [#allocation9], 1
    %3054 = vsyncpa [#allocation4], 1
    %3055 = vsyncpa [#allocation13], 1

</llo_original>
